<compile_context>
chip_gen: v7x
topology: tpu7x:2x2x1
jax: 0.10.0
libtpu: 0.0.40
codegen_flags: <defaults>
</compile_context>

<pallas_src>
from functools import partial

import jax
import jax.numpy as jnp
from jax.experimental import pallas as pl
from jax.experimental.pallas import tpu as pltpu

RAW_DIMS = [403, 300, 200, 100, 50, 25, 12, 1]
PAD_DIMS = [512, 384, 256, 128, 128, 128, 128]   # padded widths of x, h1..h6
BN_EPS = 1e-5
MAX_TILE_B = 1024


def _round_up(n, m):
    return ((n + m - 1) // m) * m


def mci_kernel(x_ref,
               w1, b1, w2, b2, w3, b3, w4, b4, w5, b5, w6, b6,
               w7, b7, o_ref):
    """One batch tile of the fully fused MLP (weights VMEM-resident)."""

    def linear(h_bf16, w_ref, b_ref):
        # bf16 x bf16 MXU matmul with f32 accumulation; bias add stays f32.
        return jnp.dot(h_bf16, w_ref[...],
                       preferred_element_type=jnp.float32) + b_ref[...]

    relu = lambda v: jnp.maximum(v, 0.0)
    relu6 = lambda v: jnp.clip(v, 0.0, 6.0)

    h = x_ref[...]                                        # (TILE_B, 512) bf16
    # Blocks 1-3: Linear(+folded BN) -> ReLU -> (Dropout = id in eval)
    h = relu(linear(h, w1, b1))                           # (TILE_B, 384) f32
    h = relu(linear(h.astype(jnp.bfloat16), w2, b2))      # (TILE_B, 256)
    h = relu(linear(h.astype(jnp.bfloat16), w3, b3))      # (TILE_B, 128)
    # Blocks 4-6: Linear(+folded BN) -> ReLU6 -> (Dropout = id in eval)
    h = relu6(linear(h.astype(jnp.bfloat16), w4, b4))     # (TILE_B, 128)
    h = relu6(linear(h.astype(jnp.bfloat16), w5, b5))     # (TILE_B, 128)
    h = relu6(linear(h.astype(jnp.bfloat16), w6, b6))     # (TILE_B, 128)
    # Final Linear(12, 1) -> Sigmoid as a VPU row-dot (padded w7 lanes are 0).
    logit = jnp.sum(h * w7[...], axis=-1, keepdims=True) + b7[...]  # (TILE_B, 1)
    o_ref[...] = jax.nn.sigmoid(logit)


def prepare_params(weights, biases, bn_params):
    """Fold eval-mode BN into Linear, zero-pad widths to 128-multiples, cast
    matmul weights to bf16.  Final (12->1) layer kept f32 as a row vector."""
    prepped = []
    for i in range(6):
        w, b = weights[i], biases[i]                       # (din, dout), (1, dout)
        gamma, beta, rmean, rvar = (bn_params[i, j] for j in range(4))
        s = gamma / jnp.sqrt(rvar + BN_EPS)
        w_f = w * s
        b_f = (b - rmean) * s + beta
        din_p, dout_p = PAD_DIMS[i], PAD_DIMS[i + 1]
        w_p = jnp.zeros((din_p, dout_p), jnp.float32).at[:w.shape[0], :w.shape[1]].set(w_f)
        b_p = jnp.zeros((1, dout_p), jnp.float32).at[:, :b.shape[1]].set(b_f)
        prepped.append(w_p.astype(jnp.bfloat16))
        prepped.append(b_p)                                # bias stays f32
    w7, b7 = weights[6], biases[6]                         # (12, 1), (1, 1)
    w7_row = jnp.zeros((1, PAD_DIMS[6]), jnp.float32).at[0, :w7.shape[0]].set(w7[:, 0])
    prepped.append(w7_row)                                 # (1, 128) f32
    prepped.append(b7.reshape(1, 1).astype(jnp.float32))   # (1, 1) f32
    return tuple(prepped)


@partial(jax.jit, static_argnames=("tile_b",))
def mci_forward(x, params, tile_b=None):
    """x: (B, 1, 403) f32.  params: prepare_params output.  Returns (B, 1, 1)."""
    B = x.shape[0]
    x2d = x.reshape(B, RAW_DIMS[0]).astype(jnp.float32)

    if tile_b is None:
        tile_b = min(MAX_TILE_B, _round_up(B, 8))
    tile_b = _round_up(tile_b, 8)
    b_pad = _round_up(B, tile_b)
    d0p = PAD_DIMS[0]

    # Zero-pad batch and feature lanes; cast matmul operand to bf16 (halves DMA).
    x_p = jnp.zeros((b_pad, d0p), jnp.bfloat16)
    x_p = x_p.at[:B, :RAW_DIMS[0]].set(x2d.astype(jnp.bfloat16))

    in_specs = [pl.BlockSpec((tile_b, d0p), lambda i: (i, 0))]
    for p in params:
        # Constant index map -> weight/bias block stays resident across tiles.
        in_specs.append(pl.BlockSpec(p.shape, lambda i: (0, 0)))

    # Advisory cost hint for XLA's scheduler (dominant matmul FLOPs + I/O bytes).
    flops = 2 * b_pad * sum(PAD_DIMS[i] * PAD_DIMS[i + 1] for i in range(6))
    bytes_accessed = (x_p.size * 2 + sum(int(p.size) * p.dtype.itemsize for p in params)
                      + b_pad * 4)
    cost = pl.CostEstimate(flops=flops, transcendentals=b_pad,
                           bytes_accessed=bytes_accessed)

    out = pl.pallas_call(
        mci_kernel,
        out_shape=jax.ShapeDtypeStruct((b_pad, 1), jnp.float32),
        grid=(b_pad // tile_b,),
        in_specs=in_specs,
        out_specs=pl.BlockSpec((tile_b, 1), lambda i: (i, 0)),
        compiler_params=pltpu.CompilerParams(
            dimension_semantics=("parallel",)),   # megacore sharding on v7x
        cost_estimate=cost,
    )(x_p, *params)

    return out[:B].reshape(B, 1, 1)


def init_params(key):
    """Deterministic PyTorch-style init: W, b ~ U(-1/sqrt(fan_in), 1/sqrt(fan_in))."""
    weights, biases = [], []
    for i in range(len(RAW_DIMS) - 1):
        d_in, d_out = RAW_DIMS[i], RAW_DIMS[i + 1]
        key, kw, kb = jax.random.split(key, 3)
        bound = 1.0 / jnp.sqrt(float(d_in))
        # Stored transposed vs PyTorch so the kernel computes x @ W.
        weights.append(jax.random.uniform(kw, (d_in, d_out), jnp.float32, -bound, bound))
        biases.append(jax.random.uniform(kb, (1, d_out), jnp.float32, -bound, bound))
    # 6 BatchNorm1d(1) layers: [gamma, beta, running_mean, running_var]
    bn_params = jnp.tile(jnp.array([[1.0, 0.0, 0.0, 1.0]], jnp.float32), (6, 1))
    return weights, biases, bn_params


def reference_forward_prepped(x, params):
    """Pure-JAX mirror of the kernel math (folded/padded/bf16 params)."""
    B = x.shape[0]
    h32 = jnp.zeros((B, PAD_DIMS[0]), jnp.float32).at[:, :RAW_DIMS[0]].set(
        x.reshape(B, RAW_DIMS[0]).astype(jnp.float32))
    acts = [lambda v: jnp.maximum(v, 0.0)] * 3 + [lambda v: jnp.clip(v, 0.0, 6.0)] * 3
    for i in range(6):
        w, b = params[2 * i], params[2 * i + 1]
        h32 = jnp.dot(h32.astype(jnp.bfloat16), w,
                      preferred_element_type=jnp.float32) + b
        h32 = acts[i](h32)
    w7, b7 = params[12], params[13]
    logit = jnp.sum(h32 * w7, axis=-1, keepdims=True) + b7
    return jax.nn.sigmoid(logit).reshape(B, 1, 1)


def reference_forward_original(x, weights, biases, bn_params):
    """Pure-f32, unfolded eval-mode forward (original module semantics)."""
    B = x.shape[0]
    h = x.reshape(B, RAW_DIMS[0]).astype(jnp.float32)
    acts = [jax.nn.relu] * 3 + [lambda v: jnp.clip(v, 0.0, 6.0)] * 3
    for i in range(6):
        h = h @ weights[i] + biases[i]
        g, be, rm, rv = bn_params[i]
        h = (h - rm) / jnp.sqrt(rv + BN_EPS) * g + be
        h = acts[i](h)
    h = h @ weights[6] + biases[6]
    return jax.nn.sigmoid(h).reshape(B, 1, 1)


if __name__ == "__main__":
    key = jax.random.PRNGKey(0)
    weights, biases, bn_params = init_params(jax.random.PRNGKey(0))
    params = prepare_params(weights, biases, bn_params)

    # Test 1: small serving-style batch, single grid tile.
    key, kx = jax.random.split(key)
    B = 8
    x = jax.random.normal(kx, (B, 1, RAW_DIMS[0]), jnp.float32)
    out = jax.block_until_ready(mci_forward(x, params))
    assert out.shape == (B, 1, 1), out.shape
    ref = reference_forward_prepped(x, params)
    assert jnp.allclose(out, ref, atol=2e-4, rtol=2e-4), float(jnp.abs(out - ref).max())
    ref_f32 = reference_forward_original(x, weights, biases, bn_params)
    assert jnp.allclose(out, ref_f32, atol=5e-2), float(jnp.abs(out - ref_f32).max())

    # Test 2: non-aligned batch with a small forced tile -> multi-tile grid +
    # batch padding path exercised (grid = 3, last tile partially padded).
    key, kx2 = jax.random.split(key)
    B2 = 37
    x2 = jax.random.normal(kx2, (B2, 1, RAW_DIMS[0]), jnp.float32)
    out2 = jax.block_until_ready(mci_forward(x2, params, tile_b=16))
    assert out2.shape == (B2, 1, 1), out2.shape
    ref2 = reference_forward_prepped(x2, params)
    assert jnp.allclose(out2, ref2, atol=2e-4, rtol=2e-4), float(jnp.abs(out2 - ref2).max())

    print("KERNEL_OK")
</pallas_src>

<mosaic_0001>
module attributes {stable_mosaic.version = 11 : i64} {
  func.func @mci_kernel(%arg0: i32, %arg1: memref<8x512xbf16, #tpu.memory_space<vmem>>, %arg2: memref<512x384xbf16, #tpu.memory_space<vmem>>, %arg3: memref<1x384xf32, #tpu.memory_space<vmem>>, %arg4: memref<384x256xbf16, #tpu.memory_space<vmem>>, %arg5: memref<1x256xf32, #tpu.memory_space<vmem>>, %arg6: memref<256x128xbf16, #tpu.memory_space<vmem>>, %arg7: memref<1x128xf32, #tpu.memory_space<vmem>>, %arg8: memref<128x128xbf16, #tpu.memory_space<vmem>>, %arg9: memref<1x128xf32, #tpu.memory_space<vmem>>, %arg10: memref<128x128xbf16, #tpu.memory_space<vmem>>, %arg11: memref<1x128xf32, #tpu.memory_space<vmem>>, %arg12: memref<128x128xbf16, #tpu.memory_space<vmem>>, %arg13: memref<1x128xf32, #tpu.memory_space<vmem>>, %arg14: memref<1x128xf32, #tpu.memory_space<vmem>>, %arg15: memref<1x1xf32, #tpu.memory_space<vmem>>, %arg16: memref<8x1xf32, #tpu.memory_space<vmem>>) attributes {dimension_semantics = [#tpu.dimension_semantics<parallel>], iteration_bounds = array<i64: 1>, scalar_prefetch = 0 : i64, scratch_operands = 0 : i64, tpu.core_type = #tpu.core_type<tc>, window_params = [{transform_indices = @transform_0, window_bounds = array<i64: 8, 512>}, {pipeline_mode = #tpu.pipeline_mode<synchronous>, transform_indices = @transform_1, window_bounds = array<i64: 512, 384>}, {pipeline_mode = #tpu.pipeline_mode<synchronous>, transform_indices = @transform_2, window_bounds = array<i64: 1, 384>}, {pipeline_mode = #tpu.pipeline_mode<synchronous>, transform_indices = @transform_3, window_bounds = array<i64: 384, 256>}, {pipeline_mode = #tpu.pipeline_mode<synchronous>, transform_indices = @transform_4, window_bounds = array<i64: 1, 256>}, {pipeline_mode = #tpu.pipeline_mode<synchronous>, transform_indices = @transform_5, window_bounds = array<i64: 256, 128>}, {pipeline_mode = #tpu.pipeline_mode<synchronous>, transform_indices = @transform_6, window_bounds = array<i64: 1, 128>}, {pipeline_mode = #tpu.pipeline_mode<synchronous>, transform_indices = @transform_7, window_bounds = array<i64: 128, 128>}, {pipeline_mode = #tpu.pipeline_mode<synchronous>, transform_indices = @transform_8, window_bounds = array<i64: 1, 128>}, {pipeline_mode = #tpu.pipeline_mode<synchronous>, transform_indices = @transform_9, window_bounds = array<i64: 128, 128>}, {pipeline_mode = #tpu.pipeline_mode<synchronous>, transform_indices = @transform_10, window_bounds = array<i64: 1, 128>}, {pipeline_mode = #tpu.pipeline_mode<synchronous>, transform_indices = @transform_11, window_bounds = array<i64: 128, 128>}, {pipeline_mode = #tpu.pipeline_mode<synchronous>, transform_indices = @transform_12, window_bounds = array<i64: 1, 128>}, {pipeline_mode = #tpu.pipeline_mode<synchronous>, transform_indices = @transform_13, window_bounds = array<i64: 1, 128>}, {pipeline_mode = #tpu.pipeline_mode<synchronous>, transform_indices = @transform_14, window_bounds = array<i64: 1, 1>}, {transform_indices = @transform_15, window_bounds = array<i64: 8, 1>}]} {
    %c0 = arith.constant 0 : index
    %c0_0 = arith.constant 0 : index
    %0 = vector.load %arg1[%c0, %c0_0] : memref<8x512xbf16, #tpu.memory_space<vmem>>, vector<8x512xbf16>
    %c0_1 = arith.constant 0 : index
    %c0_2 = arith.constant 0 : index
    %1 = vector.load %arg2[%c0_1, %c0_2] : memref<512x384xbf16, #tpu.memory_space<vmem>>, vector<512x384xbf16>
    %cst = arith.constant dense<0.000000e+00> : vector<8x384xf32>
    %2 = tpu.matmul %0, %1, %cst {dimension_numbers = #tpu.dot_dimension_numbers<[1], [0], [0], [1], [0, 0, 1, 1], [], []>} : vector<8x512xbf16>, vector<512x384xbf16>, vector<8x384xf32> -> vector<8x384xf32>
    %c0_3 = arith.constant 0 : index
    %c0_4 = arith.constant 0 : index
    %3 = vector.load %arg3[%c0_3, %c0_4] : memref<1x384xf32, #tpu.memory_space<vmem>>, vector<1x384xf32>
    %4 = vector.broadcast %3 : vector<1x384xf32> to vector<8x384xf32>
    %5 = arith.addf %2, %4 : vector<8x384xf32>
    %cst_5 = arith.constant 0.000000e+00 : f32
    %6 = vector.broadcast %cst_5 : f32 to vector<8x384xf32>
    %7 = arith.maximumf %5, %6 : vector<8x384xf32>
    %8 = arith.truncf %7 : vector<8x384xf32> to vector<8x384xbf16>
    %c0_6 = arith.constant 0 : index
    %c0_7 = arith.constant 0 : index
    %9 = vector.load %arg4[%c0_6, %c0_7] : memref<384x256xbf16, #tpu.memory_space<vmem>>, vector<384x256xbf16>
    %cst_8 = arith.constant dense<0.000000e+00> : vector<8x256xf32>
    %10 = tpu.matmul %8, %9, %cst_8 {dimension_numbers = #tpu.dot_dimension_numbers<[1], [0], [0], [1], [0, 0, 1, 1], [], []>} : vector<8x384xbf16>, vector<384x256xbf16>, vector<8x256xf32> -> vector<8x256xf32>
    %c0_9 = arith.constant 0 : index
    %c0_10 = arith.constant 0 : index
    %11 = vector.load %arg5[%c0_9, %c0_10] : memref<1x256xf32, #tpu.memory_space<vmem>>, vector<1x256xf32>
    %12 = vector.broadcast %11 : vector<1x256xf32> to vector<8x256xf32>
    %13 = arith.addf %10, %12 : vector<8x256xf32>
    %cst_11 = arith.constant 0.000000e+00 : f32
    %14 = vector.broadcast %cst_11 : f32 to vector<8x256xf32>
    %15 = arith.maximumf %13, %14 : vector<8x256xf32>
    %16 = arith.truncf %15 : vector<8x256xf32> to vector<8x256xbf16>
    %c0_12 = arith.constant 0 : index
    %c0_13 = arith.constant 0 : index
    %17 = vector.load %arg6[%c0_12, %c0_13] : memref<256x128xbf16, #tpu.memory_space<vmem>>, vector<256x128xbf16>
    %cst_14 = arith.constant dense<0.000000e+00> : vector<8x128xf32>
    %18 = tpu.matmul %16, %17, %cst_14 {dimension_numbers = #tpu.dot_dimension_numbers<[1], [0], [0], [1], [0, 0, 1, 1], [], []>} : vector<8x256xbf16>, vector<256x128xbf16>, vector<8x128xf32> -> vector<8x128xf32>
    %c0_15 = arith.constant 0 : index
    %c0_16 = arith.constant 0 : index
    %19 = vector.load %arg7[%c0_15, %c0_16] : memref<1x128xf32, #tpu.memory_space<vmem>>, vector<1x128xf32>
    %20 = vector.broadcast %19 : vector<1x128xf32> to vector<8x128xf32>
    %21 = arith.addf %18, %20 : vector<8x128xf32>
    %cst_17 = arith.constant 0.000000e+00 : f32
    %22 = vector.broadcast %cst_17 : f32 to vector<8x128xf32>
    %23 = arith.maximumf %21, %22 : vector<8x128xf32>
    %24 = arith.truncf %23 : vector<8x128xf32> to vector<8x128xbf16>
    %c0_18 = arith.constant 0 : index
    %c0_19 = arith.constant 0 : index
    %25 = vector.load %arg8[%c0_18, %c0_19] : memref<128x128xbf16, #tpu.memory_space<vmem>>, vector<128x128xbf16>
    %cst_20 = arith.constant dense<0.000000e+00> : vector<8x128xf32>
    %26 = tpu.matmul %24, %25, %cst_20 {dimension_numbers = #tpu.dot_dimension_numbers<[1], [0], [0], [1], [0, 0, 1, 1], [], []>} : vector<8x128xbf16>, vector<128x128xbf16>, vector<8x128xf32> -> vector<8x128xf32>
    %c0_21 = arith.constant 0 : index
    %c0_22 = arith.constant 0 : index
    %27 = vector.load %arg9[%c0_21, %c0_22] : memref<1x128xf32, #tpu.memory_space<vmem>>, vector<1x128xf32>
    %28 = vector.broadcast %27 : vector<1x128xf32> to vector<8x128xf32>
    %29 = arith.addf %26, %28 : vector<8x128xf32>
    %cst_23 = arith.constant 0.000000e+00 : f32
    %cst_24 = arith.constant 6.000000e+00 : f32
    %30 = vector.broadcast %cst_23 : f32 to vector<8x128xf32>
    %31 = arith.maximumf %30, %29 : vector<8x128xf32>
    %32 = vector.broadcast %cst_24 : f32 to vector<8x128xf32>
    %33 = arith.minimumf %32, %31 : vector<8x128xf32>
    %34 = arith.truncf %33 : vector<8x128xf32> to vector<8x128xbf16>
    %c0_25 = arith.constant 0 : index
    %c0_26 = arith.constant 0 : index
    %35 = vector.load %arg10[%c0_25, %c0_26] : memref<128x128xbf16, #tpu.memory_space<vmem>>, vector<128x128xbf16>
    %cst_27 = arith.constant dense<0.000000e+00> : vector<8x128xf32>
    %36 = tpu.matmul %34, %35, %cst_27 {dimension_numbers = #tpu.dot_dimension_numbers<[1], [0], [0], [1], [0, 0, 1, 1], [], []>} : vector<8x128xbf16>, vector<128x128xbf16>, vector<8x128xf32> -> vector<8x128xf32>
    %c0_28 = arith.constant 0 : index
    %c0_29 = arith.constant 0 : index
    %37 = vector.load %arg11[%c0_28, %c0_29] : memref<1x128xf32, #tpu.memory_space<vmem>>, vector<1x128xf32>
    %38 = vector.broadcast %37 : vector<1x128xf32> to vector<8x128xf32>
    %39 = arith.addf %36, %38 : vector<8x128xf32>
    %cst_30 = arith.constant 0.000000e+00 : f32
    %cst_31 = arith.constant 6.000000e+00 : f32
    %40 = vector.broadcast %cst_30 : f32 to vector<8x128xf32>
    %41 = arith.maximumf %40, %39 : vector<8x128xf32>
    %42 = vector.broadcast %cst_31 : f32 to vector<8x128xf32>
    %43 = arith.minimumf %42, %41 : vector<8x128xf32>
    %44 = arith.truncf %43 : vector<8x128xf32> to vector<8x128xbf16>
    %c0_32 = arith.constant 0 : index
    %c0_33 = arith.constant 0 : index
    %45 = vector.load %arg12[%c0_32, %c0_33] : memref<128x128xbf16, #tpu.memory_space<vmem>>, vector<128x128xbf16>
    %cst_34 = arith.constant dense<0.000000e+00> : vector<8x128xf32>
    %46 = tpu.matmul %44, %45, %cst_34 {dimension_numbers = #tpu.dot_dimension_numbers<[1], [0], [0], [1], [0, 0, 1, 1], [], []>} : vector<8x128xbf16>, vector<128x128xbf16>, vector<8x128xf32> -> vector<8x128xf32>
    %c0_35 = arith.constant 0 : index
    %c0_36 = arith.constant 0 : index
    %47 = vector.load %arg13[%c0_35, %c0_36] : memref<1x128xf32, #tpu.memory_space<vmem>>, vector<1x128xf32>
    %48 = vector.broadcast %47 : vector<1x128xf32> to vector<8x128xf32>
    %49 = arith.addf %46, %48 : vector<8x128xf32>
    %cst_37 = arith.constant 0.000000e+00 : f32
    %cst_38 = arith.constant 6.000000e+00 : f32
    %50 = vector.broadcast %cst_37 : f32 to vector<8x128xf32>
    %51 = arith.maximumf %50, %49 : vector<8x128xf32>
    %52 = vector.broadcast %cst_38 : f32 to vector<8x128xf32>
    %53 = arith.minimumf %52, %51 : vector<8x128xf32>
    %c0_39 = arith.constant 0 : index
    %c0_40 = arith.constant 0 : index
    %54 = vector.load %arg14[%c0_39, %c0_40] : memref<1x128xf32, #tpu.memory_space<vmem>>, vector<1x128xf32>
    %55 = vector.broadcast %54 : vector<1x128xf32> to vector<8x128xf32>
    %56 = arith.mulf %53, %55 : vector<8x128xf32>
    %cst_41 = arith.constant dense<0.000000e+00> : vector<8xf32>
    %57 = vector.multi_reduction <add>, %56, %cst_41 [1] : vector<8x128xf32> to vector<8xf32>
    %58 = vector.shape_cast %57 : vector<8xf32> to vector<8x1xf32>
    %c0_42 = arith.constant 0 : index
    %c0_43 = arith.constant 0 : index
    %59 = vector.load %arg15[%c0_42, %c0_43] : memref<1x1xf32, #tpu.memory_space<vmem>>, vector<1x1xf32>
    %60 = vector.broadcast %59 : vector<1x1xf32> to vector<8x1xf32>
    %61 = arith.addf %58, %60 : vector<8x1xf32>
    %62 = arith.negf %61 : vector<8x1xf32>
    %63 = math.exp %62 : vector<8x1xf32>
    %cst_44 = arith.constant 1.000000e+00 : f32
    %64 = vector.broadcast %cst_44 : f32 to vector<8x1xf32>
    %65 = arith.addf %64, %63 : vector<8x1xf32>
    %66 = arith.divf %64, %65 : vector<8x1xf32>
    %c0_45 = arith.constant 0 : index
    %c0_46 = arith.constant 0 : index
    %67 = vector.load %arg16[%c0_45, %c0_46] : memref<8x1xf32, #tpu.memory_space<vmem>>, vector<8x1xf32>
    tpu.vector_store %arg16[%c0_45, %c0_46], %66 {strides = array<i32>} : memref<8x1xf32, #tpu.memory_space<vmem>>, vector<8x1xf32>,
    return
  }
  func.func @transform_0(%arg0: i32) -> (i32, i32) {
    %c0_i32 = arith.constant 0 : i32
    %c0_i32_0 = arith.constant 0 : i32
    return %arg0, %c0_i32 : i32, i32
  }
  func.func @transform_1(%arg0: i32) -> (i32, i32) {
    %c0_i32 = arith.constant 0 : i32
    %c0_i32_0 = arith.constant 0 : i32
    %c0_i32_1 = arith.constant 0 : i32
    return %c0_i32, %c0_i32_0 : i32, i32
  }
  func.func @transform_2(%arg0: i32) -> (i32, i32) {
    %c0_i32 = arith.constant 0 : i32
    %c0_i32_0 = arith.constant 0 : i32
    %c0_i32_1 = arith.constant 0 : i32
    return %c0_i32, %c0_i32_0 : i32, i32
  }
  func.func @transform_3(%arg0: i32) -> (i32, i32) {
    %c0_i32 = arith.constant 0 : i32
    %c0_i32_0 = arith.constant 0 : i32
    %c0_i32_1 = arith.constant 0 : i32
    return %c0_i32, %c0_i32_0 : i32, i32
  }
  func.func @transform_4(%arg0: i32) -> (i32, i32) {
    %c0_i32 = arith.constant 0 : i32
    %c0_i32_0 = arith.constant 0 : i32
    %c0_i32_1 = arith.constant 0 : i32
    return %c0_i32, %c0_i32_0 : i32, i32
  }
  func.func @transform_5(%arg0: i32) -> (i32, i32) {
    %c0_i32 = arith.constant 0 : i32
    %c0_i32_0 = arith.constant 0 : i32
    %c0_i32_1 = arith.constant 0 : i32
    return %c0_i32, %c0_i32_0 : i32, i32
  }
  func.func @transform_6(%arg0: i32) -> (i32, i32) {
    %c0_i32 = arith.constant 0 : i32
    %c0_i32_0 = arith.constant 0 : i32
    %c0_i32_1 = arith.constant 0 : i32
    return %c0_i32, %c0_i32_0 : i32, i32
  }
  func.func @transform_7(%arg0: i32) -> (i32, i32) {
    %c0_i32 = arith.constant 0 : i32
    %c0_i32_0 = arith.constant 0 : i32
    %c0_i32_1 = arith.constant 0 : i32
    return %c0_i32, %c0_i32_0 : i32, i32
  }
  func.func @transform_8(%arg0: i32) -> (i32, i32) {
    %c0_i32 = arith.constant 0 : i32
    %c0_i32_0 = arith.constant 0 : i32
    %c0_i32_1 = arith.constant 0 : i32
    return %c0_i32, %c0_i32_0 : i32, i32
  }
  func.func @transform_9(%arg0: i32) -> (i32, i32) {
    %c0_i32 = arith.constant 0 : i32
    %c0_i32_0 = arith.constant 0 : i32
    %c0_i32_1 = arith.constant 0 : i32
    return %c0_i32, %c0_i32_0 : i32, i32
  }
  func.func @transform_10(%arg0: i32) -> (i32, i32) {
    %c0_i32 = arith.constant 0 : i32
    %c0_i32_0 = arith.constant 0 : i32
    %c0_i32_1 = arith.constant 0 : i32
    return %c0_i32, %c0_i32_0 : i32, i32
  }
  func.func @transform_11(%arg0: i32) -> (i32, i32) {
    %c0_i32 = arith.constant 0 : i32
    %c0_i32_0 = arith.constant 0 : i32
    %c0_i32_1 = arith.constant 0 : i32
    return %c0_i32, %c0_i32_0 : i32, i32
  }
  func.func @transform_12(%arg0: i32) -> (i32, i32) {
    %c0_i32 = arith.constant 0 : i32
    %c0_i32_0 = arith.constant 0 : i32
    %c0_i32_1 = arith.constant 0 : i32
    return %c0_i32, %c0_i32_0 : i32, i32
  }
  func.func @transform_13(%arg0: i32) -> (i32, i32) {
    %c0_i32 = arith.constant 0 : i32
    %c0_i32_0 = arith.constant 0 : i32
    %c0_i32_1 = arith.constant 0 : i32
    return %c0_i32, %c0_i32_0 : i32, i32
  }
  func.func @transform_14(%arg0: i32) -> (i32, i32) {
    %c0_i32 = arith.constant 0 : i32
    %c0_i32_0 = arith.constant 0 : i32
    %c0_i32_1 = arith.constant 0 : i32
    return %c0_i32, %c0_i32_0 : i32, i32
  }
  func.func @transform_15(%arg0: i32) -> (i32, i32) {
    %c0_i32 = arith.constant 0 : i32
    %c0_i32_0 = arith.constant 0 : i32
    return %arg0, %c0_i32 : i32, i32
  }
}

</mosaic_0001>

<llo_original>
// kernel: mci_forward.1
$region0: #{mci_forward.1}
  #allocation0 [shape = 'u32[]', space=smem, size = 0x4, offset = 0x4, fixed_abs, tag = 'smem constant byte address 0x4 - core index']
  #allocation1 [shape = 'u32[144,128]{1,0:T(1,128)}', space=vmem, size = 0x12000, scoped, tag = 'internal scratch']
  #allocation2 [shape = 'f32[1,1]{1,0:T(1,128)S(1)}', space=vmem, size = 0x200, scoped, tag = 'scoped memory for mci_forward.1']
  %s0 = inlined_call_operand.vmem [shape: bf16[8,512], index: 0, kind: input, shape index: {}]
  %s1 = inlined_call_operand.hbm [shape: bf16[512,384], index: 1, kind: input, shape index: {}]
  %s2 = inlined_call_operand.vmem [shape: f32[1,384], index: 2, kind: input, shape index: {}]
  %s3 = inlined_call_operand.hbm [shape: bf16[384,256], index: 3, kind: input, shape index: {}]
  %s4 = inlined_call_operand.hbm [shape: f32[1,256], index: 4, kind: input, shape index: {}]
  %s5 = inlined_call_operand.hbm [shape: bf16[256,128], index: 5, kind: input, shape index: {}]
  %s6 = inlined_call_operand.hbm [shape: f32[1,128], index: 6, kind: input, shape index: {}]
  %s7 = inlined_call_operand.vmem [shape: bf16[128,128], index: 7, kind: input, shape index: {}]
  %s8 = inlined_call_operand.hbm [shape: f32[1,128], index: 8, kind: input, shape index: {}]
  %s9 = inlined_call_operand.hbm [shape: bf16[128,128], index: 9, kind: input, shape index: {}]
  %s10 = inlined_call_operand.hbm [shape: f32[1,128], index: 10, kind: input, shape index: {}]
  %s11 = inlined_call_operand.vmem [shape: bf16[128,128], index: 11, kind: input, shape index: {}]
  %s12 = inlined_call_operand.hbm [shape: f32[1,128], index: 12, kind: input, shape index: {}]
  %s13 = inlined_call_operand.hbm [shape: f32[1,128], index: 13, kind: input, shape index: {}]
  %s14 = inlined_call_operand.<no memory space> [shape: f32[1,1], index: 14, kind: input, shape index: {}]
  %s15 = inlined_call_operand.vmem [shape: f32[8,1], index: 15, kind: output, shape index: {}]
  %s16 = sld [smem:[#allocation0]]
  $region110: #{mci_forward.1} parent=0
    _
  %s18 = ssub.s32 1, %s16
  %s19 = scalar_select 0, %s18, %s16
  %v20 = vstv %s14
  %21 = vst [vmem:[#allocation2] sm:$0x1] %v20
  $region1: #{mci_forward.1} parent=0
    #allocation3 [shape = 'u8[393216]{0}', space=vmem, size = 0x60000, scoped, tag = 'input window, operand 1, single buffered']
    #allocation4 [shape = 's32[1]{0}', space=sflag, size = 0x4, scoped, tag = 'scoped memory for mci_forward.1']
    #allocation5 [shape = 'u8[196608]{0}', space=vmem, size = 0x30000, scoped, tag = 'input window, operand 3, single buffered']
    #allocation6 [shape = 's32[1]{0}', space=sflag, size = 0x4, scoped, tag = 'scoped memory for mci_forward.1']
    #allocation7 [shape = 'u8[1024]{0}', space=vmem, size = 0x400, scoped, tag = 'input window, operand 4, single buffered']
    #allocation8 [shape = 'u8[65536]{0}', space=vmem, size = 0x10000, scoped, tag = 'input window, operand 5, single buffered']
    #allocation9 [shape = 's32[1]{0}', space=sflag, size = 0x4, scoped, tag = 'scoped memory for mci_forward.1']
    #allocation10 [shape = 'u8[512]{0}', space=vmem, size = 0x400, scoped, tag = 'input window, operand 6, single buffered']
    #allocation11 [shape = 'u8[512]{0}', space=vmem, size = 0x400, scoped, tag = 'input window, operand 8, single buffered']
    #allocation12 [shape = 's32[1]{0}', space=sflag, size = 0x4, scoped, tag = 'scoped memory for mci_forward.1']
    #allocation13 [shape = 'u8[32768]{0}', space=vmem, size = 0x8000, scoped, tag = 'input window, operand 9, single buffered']
    #allocation14 [shape = 'u8[512]{0}', space=vmem, size = 0x400, scoped, tag = 'input window, operand 10, single buffered']
    #allocation15 [shape = 's32[1]{0}', space=sflag, size = 0x4, scoped, tag = 'scoped memory for mci_forward.1']
    #allocation16 [shape = 'u8[512]{0}', space=vmem, size = 0x400, scoped, tag = 'input window, operand 12, single buffered']
    #allocation17 [shape = 'u8[512]{0}', space=vmem, size = 0x400, scoped, tag = 'input window, operand 13, single buffered']
    #allocation18 [shape = 's32[1]{0}', space=sflag, size = 0x4, scoped, tag = 'scoped memory for mci_forward.1']
    %22 = vsyncpa [#allocation4], 0
    %23 = vsyncpa [#allocation6], 0
    %24 = vsyncpa [#allocation9], 0
    %25 = vsyncpa [#allocation12], 0
    %26 = vsyncpa [#allocation15], 0
    %27 = vsyncpa [#allocation18], 0
    // Predicated region
    $region2: #{mci_forward.1} parent=1 // pred_check
      _
    $region3: #{mci_forward.1} parent=1 // pred_check_branch
      %29 = sbr.rel (0) target = $region5
    $region4: #{mci_forward.1} parent=1 // pred_region
      _
    $region5: #{mci_forward.1} parent=1 // pred_fallthru
      _
    // Predicated region
    $region6: #{mci_forward.1} parent=1 // pred_check
      _
    $region7: #{mci_forward.1} parent=1 // pred_check_branch
      %31 = sbr.rel (0) target = $region9
    $region8: #{mci_forward.1} parent=1 // pred_region
      %s33 = ssub.s32 12288, 12288
      %34 = vsyncadd [#allocation4], %s33
      %s35 = sshll.u32 [#allocation3], 4
      %s36 = int_to_ptr.vmem [resolvable:$true] %s35
      %41 = dma.hbm_to_vmem [thread:$0]  %s1, 12288, %s36, [#allocation4], 192, 192, 12
    $region9: #{mci_forward.1} parent=1 // pred_fallthru
      _
    // Predicated region
    $region10: #{mci_forward.1} parent=1 // pred_check
      _
    $region11: #{mci_forward.1} parent=1 // pred_check_branch
      %43 = sbr.rel (0) target = $region13
    $region12: #{mci_forward.1} parent=1 // pred_region
      _
    $region13: #{mci_forward.1} parent=1 // pred_fallthru
      _
    // Predicated region
    $region14: #{mci_forward.1} parent=1 // pred_check
      _
    $region15: #{mci_forward.1} parent=1 // pred_check_branch
      %45 = sbr.rel (0) target = $region17
    $region16: #{mci_forward.1} parent=1 // pred_region
      %s47 = ssub.s32 6144, 6144
      %48 = vsyncadd [#allocation6], %s47
      %s49 = sshll.u32 [#allocation5], 4
      %s50 = int_to_ptr.vmem [resolvable:$true] %s49
      %55 = dma.hbm_to_vmem [thread:$0]  %s3, 6144, %s50, [#allocation6], 128, 128, 8
    $region17: #{mci_forward.1} parent=1 // pred_fallthru
      _
    // Predicated region
    $region18: #{mci_forward.1} parent=1 // pred_check
      _
    $region19: #{mci_forward.1} parent=1 // pred_check_branch
      %57 = sbr.rel (0) target = $region21
    $region20: #{mci_forward.1} parent=1 // pred_region
      %s59 = ssub.s32 32, 32
      %60 = vsyncadd [#allocation6], %s59
      %s62 = sshll.u32 [#allocation7], 4
      %s63 = int_to_ptr.vmem [resolvable:$true] %s62
      %65 = dma.hbm_to_vmem [thread:$0]  %s4, 32, %s63, [#allocation6]
    $region21: #{mci_forward.1} parent=1 // pred_fallthru
      _
    // Predicated region
    $region22: #{mci_forward.1} parent=1 // pred_check
      _
    $region23: #{mci_forward.1} parent=1 // pred_check_branch
      %67 = sbr.rel (0) target = $region25
    $region24: #{mci_forward.1} parent=1 // pred_region
      %s69 = ssub.s32 2048, 2048
      %70 = vsyncadd [#allocation9], %s69
      %s71 = sshll.u32 [#allocation8], 4
      %s72 = int_to_ptr.vmem [resolvable:$true] %s71
      %77 = dma.hbm_to_vmem [thread:$0]  %s5, 2048, %s72, [#allocation9], 64, 64, 4
    $region25: #{mci_forward.1} parent=1 // pred_fallthru
      _
    // Predicated region
    $region26: #{mci_forward.1} parent=1 // pred_check
      _
    $region27: #{mci_forward.1} parent=1 // pred_check_branch
      %79 = sbr.rel (0) target = $region29
    $region28: #{mci_forward.1} parent=1 // pred_region
      %s81 = ssub.s32 16, 16
      %82 = vsyncadd [#allocation9], %s81
      %s84 = sshll.u32 [#allocation10], 4
      %s85 = int_to_ptr.vmem [resolvable:$true] %s84
      %87 = dma.hbm_to_vmem [thread:$0]  %s6, 16, %s85, [#allocation9]
    $region29: #{mci_forward.1} parent=1 // pred_fallthru
      _
    // Predicated region
    $region30: #{mci_forward.1} parent=1 // pred_check
      _
    $region31: #{mci_forward.1} parent=1 // pred_check_branch
      %89 = sbr.rel (0) target = $region33
    $region32: #{mci_forward.1} parent=1 // pred_region
      _
    $region33: #{mci_forward.1} parent=1 // pred_fallthru
      _
    // Predicated region
    $region34: #{mci_forward.1} parent=1 // pred_check
      _
    $region35: #{mci_forward.1} parent=1 // pred_check_branch
      %91 = sbr.rel (0) target = $region37
    $region36: #{mci_forward.1} parent=1 // pred_region
      %s93 = ssub.s32 16, 16
      %94 = vsyncadd [#allocation12], %s93
      %s96 = sshll.u32 [#allocation11], 4
      %s97 = int_to_ptr.vmem [resolvable:$true] %s96
      %99 = dma.hbm_to_vmem [thread:$0]  %s8, 16, %s97, [#allocation12]
    $region37: #{mci_forward.1} parent=1 // pred_fallthru
      _
    // Predicated region
    $region38: #{mci_forward.1} parent=1 // pred_check
      _
    $region39: #{mci_forward.1} parent=1 // pred_check_branch
      %101 = sbr.rel (0) target = $region41
    $region40: #{mci_forward.1} parent=1 // pred_region
      %s103 = ssub.s32 1024, 1024
      %104 = vsyncadd [#allocation12], %s103
      %s105 = sshll.u32 [#allocation13], 4
      %s106 = int_to_ptr.vmem [resolvable:$true] %s105
      %111 = dma.hbm_to_vmem [thread:$0]  %s9, 1024, %s106, [#allocation12], 64, 64, 4
    $region41: #{mci_forward.1} parent=1 // pred_fallthru
      _
    // Predicated region
    $region42: #{mci_forward.1} parent=1 // pred_check
      _
    $region43: #{mci_forward.1} parent=1 // pred_check_branch
      %113 = sbr.rel (0) target = $region45
    $region44: #{mci_forward.1} parent=1 // pred_region
      %s115 = ssub.s32 16, 16
      %116 = vsyncadd [#allocation15], %s115
      %s118 = sshll.u32 [#allocation14], 4
      %s119 = int_to_ptr.vmem [resolvable:$true] %s118
      %121 = dma.hbm_to_vmem [thread:$0]  %s10, 16, %s119, [#allocation15]
    $region45: #{mci_forward.1} parent=1 // pred_fallthru
      _
    // Predicated region
    $region46: #{mci_forward.1} parent=1 // pred_check
      _
    $region47: #{mci_forward.1} parent=1 // pred_check_branch
      %123 = sbr.rel (0) target = $region49
    $region48: #{mci_forward.1} parent=1 // pred_region
      _
    $region49: #{mci_forward.1} parent=1 // pred_fallthru
      _
    // Predicated region
    $region50: #{mci_forward.1} parent=1 // pred_check
      _
    $region51: #{mci_forward.1} parent=1 // pred_check_branch
      %125 = sbr.rel (0) target = $region53
    $region52: #{mci_forward.1} parent=1 // pred_region
      %s127 = ssub.s32 16, 16
      %128 = vsyncadd [#allocation15], %s127
      %s130 = sshll.u32 [#allocation16], 4
      %s131 = int_to_ptr.vmem [resolvable:$true] %s130
      %133 = dma.hbm_to_vmem [thread:$0]  %s12, 16, %s131, [#allocation15]
    $region53: #{mci_forward.1} parent=1 // pred_fallthru
      _
    // Predicated region
    $region54: #{mci_forward.1} parent=1 // pred_check
      _
    $region55: #{mci_forward.1} parent=1 // pred_check_branch
      %135 = sbr.rel (0) target = $region57
    $region56: #{mci_forward.1} parent=1 // pred_region
      %s137 = ssub.s32 16, 16
      %138 = vsyncadd [#allocation18], %s137
      %s140 = sshll.u32 [#allocation17], 4
      %s141 = int_to_ptr.vmem [resolvable:$true] %s140
      %143 = dma.hbm_to_vmem [thread:$0]  %s13, 16, %s141, [#allocation18]
    $region57: #{mci_forward.1} parent=1 // pred_fallthru
      _
    // Predicated region
    $region58: #{mci_forward.1} parent=1 // pred_check
      _
    $region59: #{mci_forward.1} parent=1 // pred_check_branch
      %145 = sbr.rel (0) target = $region61
    $region60: #{mci_forward.1} parent=1 // pred_region
      _
    $region61: #{mci_forward.1} parent=1 // pred_fallthru
      _
    // Predicated region
    $region62: #{mci_forward.1} parent=1 // pred_check
      _
    $region63: #{mci_forward.1} parent=1 // pred_check_branch
      %147 = sbr.rel (0) target = $region65
    $region64: #{mci_forward.1} parent=1 // pred_region
      %148 = dma.done [#allocation4], 12288
    $region65: #{mci_forward.1} parent=1 // pred_fallthru
      _
    // Predicated region
    $region66: #{mci_forward.1} parent=1 // pred_check
      _
    $region67: #{mci_forward.1} parent=1 // pred_check_branch
      %150 = sbr.rel (0) target = $region69
    $region68: #{mci_forward.1} parent=1 // pred_region
      %151 = dma.done [#allocation6], 6144
    $region69: #{mci_forward.1} parent=1 // pred_fallthru
      _
    // Predicated region
    $region70: #{mci_forward.1} parent=1 // pred_check
      _
    $region71: #{mci_forward.1} parent=1 // pred_check_branch
      %153 = sbr.rel (0) target = $region73
    $region72: #{mci_forward.1} parent=1 // pred_region
      %154 = dma.done [#allocation6], 32
    $region73: #{mci_forward.1} parent=1 // pred_fallthru
      _
    // Predicated region
    $region74: #{mci_forward.1} parent=1 // pred_check
      _
    $region75: #{mci_forward.1} parent=1 // pred_check_branch
      %156 = sbr.rel (0) target = $region77
    $region76: #{mci_forward.1} parent=1 // pred_region
      %157 = dma.done [#allocation9], 2048
    $region77: #{mci_forward.1} parent=1 // pred_fallthru
      _
    // Predicated region
    $region78: #{mci_forward.1} parent=1 // pred_check
      _
    $region79: #{mci_forward.1} parent=1 // pred_check_branch
      %159 = sbr.rel (0) target = $region81
    $region80: #{mci_forward.1} parent=1 // pred_region
      %160 = dma.done [#allocation9], 16
    $region81: #{mci_forward.1} parent=1 // pred_fallthru
      _
    // Predicated region
    $region82: #{mci_forward.1} parent=1 // pred_check
      _
    $region83: #{mci_forward.1} parent=1 // pred_check_branch
      %162 = sbr.rel (0) target = $region85
    $region84: #{mci_forward.1} parent=1 // pred_region
      %163 = dma.done [#allocation12], 16
    $region85: #{mci_forward.1} parent=1 // pred_fallthru
      _
    // Predicated region
    $region86: #{mci_forward.1} parent=1 // pred_check
      _
    $region87: #{mci_forward.1} parent=1 // pred_check_branch
      %165 = sbr.rel (0) target = $region89
    $region88: #{mci_forward.1} parent=1 // pred_region
      %166 = dma.done [#allocation12], 1024
    $region89: #{mci_forward.1} parent=1 // pred_fallthru
      _
    // Predicated region
    $region90: #{mci_forward.1} parent=1 // pred_check
      _
    $region91: #{mci_forward.1} parent=1 // pred_check_branch
      %168 = sbr.rel (0) target = $region93
    $region92: #{mci_forward.1} parent=1 // pred_region
      %169 = dma.done [#allocation15], 16
    $region93: #{mci_forward.1} parent=1 // pred_fallthru
      _
    // Predicated region
    $region94: #{mci_forward.1} parent=1 // pred_check
      _
    $region95: #{mci_forward.1} parent=1 // pred_check_branch
      %171 = sbr.rel (0) target = $region97
    $region96: #{mci_forward.1} parent=1 // pred_region
      %172 = dma.done [#allocation15], 16
    $region97: #{mci_forward.1} parent=1 // pred_fallthru
      _
    // Predicated region
    $region98: #{mci_forward.1} parent=1 // pred_check
      _
    $region99: #{mci_forward.1} parent=1 // pred_check_branch
      %174 = sbr.rel (0) target = $region101
    $region100: #{mci_forward.1} parent=1 // pred_region
      %175 = dma.done [#allocation18], 16
    $region101: #{mci_forward.1} parent=1 // pred_fallthru
      _
    %v177 = vld [vmem:[%s0] sm:$0xff]
    %v178 = vld [vmem:[%s0 + $0x8] sm:$0xff]
    %v179 = vld [vmem:[#allocation3] sm:$0xff]
    %v180 = vld [vmem:[#allocation3 + $0x8] sm:$0xf]
    %v181 = vld [vmem:[#allocation3 + $0xc] sm:$0xff]
    %v182 = vld [vmem:[#allocation3 + $0x14] sm:$0xf]
    %v183 = vld [vmem:[#allocation3 + $0x18] sm:$0xff]
    %v184 = vld [vmem:[#allocation3 + $0x20] sm:$0xf]
    %v185 = vld [vmem:[#allocation3 + $0x24] sm:$0xff]
    %v186 = vld [vmem:[#allocation3 + $0x2c] sm:$0xf]
    %v187 = vld [vmem:[#allocation3 + $0x30] sm:$0xff]
    %v188 = vld [vmem:[#allocation3 + $0x38] sm:$0xf]
    %v189 = vld [vmem:[#allocation3 + $0x3c] sm:$0xff]
    %v190 = vld [vmem:[#allocation3 + $0x44] sm:$0xf]
    %v191 = vld [vmem:[#allocation3 + $0x48] sm:$0xff]
    %v192 = vld [vmem:[#allocation3 + $0x50] sm:$0xf]
    %v193 = vld [vmem:[#allocation3 + $0x54] sm:$0xff]
    %v194 = vld [vmem:[#allocation3 + $0x5c] sm:$0xf]
    %v195 = vld [vmem:[#allocation3 + $0x60] sm:$0xff]
    %v196 = vld [vmem:[#allocation3 + $0x68] sm:$0xf]
    %v197 = vld [vmem:[#allocation3 + $0x6c] sm:$0xff]
    %v198 = vld [vmem:[#allocation3 + $0x74] sm:$0xf]
    %v199 = vld [vmem:[#allocation3 + $0x78] sm:$0xff]
    %v200 = vld [vmem:[#allocation3 + $0x80] sm:$0xf]
    %v201 = vld [vmem:[#allocation3 + $0x84] sm:$0xff]
    %v202 = vld [vmem:[#allocation3 + $0x8c] sm:$0xf]
    %v203 = vld [vmem:[#allocation3 + $0x90] sm:$0xff]
    %v204 = vld [vmem:[#allocation3 + $0x98] sm:$0xf]
    %v205 = vld [vmem:[#allocation3 + $0x9c] sm:$0xff]
    %v206 = vld [vmem:[#allocation3 + $0xa4] sm:$0xf]
    %v207 = vld [vmem:[#allocation3 + $0xa8] sm:$0xff]
    %v208 = vld [vmem:[#allocation3 + $0xb0] sm:$0xf]
    %v209 = vld [vmem:[#allocation3 + $0xb4] sm:$0xff]
    %v210 = vld [vmem:[#allocation3 + $0xbc] sm:$0xf]
    %v211 = vld [vmem:[#allocation3 + $0xc0] sm:$0xff]
    %v212 = vld [vmem:[#allocation3 + $0xc8] sm:$0xf]
    %v213 = vld [vmem:[#allocation3 + $0xcc] sm:$0xff]
    %v214 = vld [vmem:[#allocation3 + $0xd4] sm:$0xf]
    %v215 = vld [vmem:[#allocation3 + $0xd8] sm:$0xff]
    %v216 = vld [vmem:[#allocation3 + $0xe0] sm:$0xf]
    %v217 = vld [vmem:[#allocation3 + $0xe4] sm:$0xff]
    %v218 = vld [vmem:[#allocation3 + $0xec] sm:$0xf]
    %v219 = vld [vmem:[#allocation3 + $0xf0] sm:$0xff]
    %v220 = vld [vmem:[#allocation3 + $0xf8] sm:$0xf]
    %v221 = vld [vmem:[#allocation3 + $0xfc] sm:$0xff]
    %v222 = vld [vmem:[#allocation3 + $0x104] sm:$0xf]
    %v223 = vld [vmem:[#allocation3 + $0x108] sm:$0xff]
    %v224 = vld [vmem:[#allocation3 + $0x110] sm:$0xf]
    %v225 = vld [vmem:[#allocation3 + $0x114] sm:$0xff]
    %v226 = vld [vmem:[#allocation3 + $0x11c] sm:$0xf]
    %v227 = vld [vmem:[#allocation3 + $0x120] sm:$0xff]
    %v228 = vld [vmem:[#allocation3 + $0x128] sm:$0xf]
    %v229 = vld [vmem:[#allocation3 + $0x12c] sm:$0xff]
    %v230 = vld [vmem:[#allocation3 + $0x134] sm:$0xf]
    %v231 = vld [vmem:[#allocation3 + $0x138] sm:$0xff]
    %v232 = vld [vmem:[#allocation3 + $0x140] sm:$0xf]
    %v233 = vld [vmem:[#allocation3 + $0x144] sm:$0xff]
    %v234 = vld [vmem:[#allocation3 + $0x14c] sm:$0xf]
    %v235 = vld [vmem:[#allocation3 + $0x150] sm:$0xff]
    %v236 = vld [vmem:[#allocation3 + $0x158] sm:$0xf]
    %v237 = vld [vmem:[#allocation3 + $0x15c] sm:$0xff]
    %v238 = vld [vmem:[#allocation3 + $0x164] sm:$0xf]
    %v239 = vld [vmem:[#allocation3 + $0x168] sm:$0xff]
    %v240 = vld [vmem:[#allocation3 + $0x170] sm:$0xf]
    %v241 = vld [vmem:[#allocation3 + $0x174] sm:$0xff]
    %v242 = vld [vmem:[#allocation3 + $0x17c] sm:$0xf]
    %v243 = vld [vmem:[#allocation3 + $0x180] sm:$0xff]
    %v244 = vld [vmem:[#allocation3 + $0x188] sm:$0xf]
    %v245 = vld [vmem:[#allocation3 + $0x18c] sm:$0xff]
    %v246 = vld [vmem:[#allocation3 + $0x194] sm:$0xf]
    %v247 = vld [vmem:[#allocation3 + $0x198] sm:$0xff]
    %v248 = vld [vmem:[#allocation3 + $0x1a0] sm:$0xf]
    %v249 = vld [vmem:[#allocation3 + $0x1a4] sm:$0xff]
    %v250 = vld [vmem:[#allocation3 + $0x1ac] sm:$0xf]
    %v251 = vld [vmem:[#allocation3 + $0x1b0] sm:$0xff]
    %v252 = vld [vmem:[#allocation3 + $0x1b8] sm:$0xf]
    %v253 = vld [vmem:[#allocation3 + $0x1bc] sm:$0xff]
    %v254 = vld [vmem:[#allocation3 + $0x1c4] sm:$0xf]
    %v255 = vld [vmem:[#allocation3 + $0x1c8] sm:$0xff]
    %v256 = vld [vmem:[#allocation3 + $0x1d0] sm:$0xf]
    %v257 = vld [vmem:[#allocation3 + $0x1d4] sm:$0xff]
    %v258 = vld [vmem:[#allocation3 + $0x1dc] sm:$0xf]
    %v259 = vld [vmem:[#allocation3 + $0x1e0] sm:$0xff]
    %v260 = vld [vmem:[#allocation3 + $0x1e8] sm:$0xf]
    %v261 = vld [vmem:[#allocation3 + $0x1ec] sm:$0xff]
    %v262 = vld [vmem:[#allocation3 + $0x1f4] sm:$0xf]
    %v263 = vld [vmem:[#allocation3 + $0x1f8] sm:$0xff]
    %v264 = vld [vmem:[#allocation3 + $0x200] sm:$0xf]
    %v265 = vld [vmem:[#allocation3 + $0x204] sm:$0xff]
    %v266 = vld [vmem:[#allocation3 + $0x20c] sm:$0xf]
    %v267 = vld [vmem:[#allocation3 + $0x210] sm:$0xff]
    %v268 = vld [vmem:[#allocation3 + $0x218] sm:$0xf]
    %v269 = vld [vmem:[#allocation3 + $0x21c] sm:$0xff]
    %v270 = vld [vmem:[#allocation3 + $0x224] sm:$0xf]
    %v271 = vld [vmem:[#allocation3 + $0x228] sm:$0xff]
    %v272 = vld [vmem:[#allocation3 + $0x230] sm:$0xf]
    %v273 = vld [vmem:[#allocation3 + $0x234] sm:$0xff]
    %v274 = vld [vmem:[#allocation3 + $0x23c] sm:$0xf]
    %v275 = vld [vmem:[#allocation3 + $0x240] sm:$0xff]
    %v276 = vld [vmem:[#allocation3 + $0x248] sm:$0xf]
    %v277 = vld [vmem:[#allocation3 + $0x24c] sm:$0xff]
    %v278 = vld [vmem:[#allocation3 + $0x254] sm:$0xf]
    %v279 = vld [vmem:[#allocation3 + $0x258] sm:$0xff]
    %v280 = vld [vmem:[#allocation3 + $0x260] sm:$0xf]
    %v281 = vld [vmem:[#allocation3 + $0x264] sm:$0xff]
    %v282 = vld [vmem:[#allocation3 + $0x26c] sm:$0xf]
    %v283 = vld [vmem:[#allocation3 + $0x270] sm:$0xff]
    %v284 = vld [vmem:[#allocation3 + $0x278] sm:$0xf]
    %v285 = vld [vmem:[#allocation3 + $0x27c] sm:$0xff]
    %v286 = vld [vmem:[#allocation3 + $0x284] sm:$0xf]
    %v287 = vld [vmem:[#allocation3 + $0x288] sm:$0xff]
    %v288 = vld [vmem:[#allocation3 + $0x290] sm:$0xf]
    %v289 = vld [vmem:[#allocation3 + $0x294] sm:$0xff]
    %v290 = vld [vmem:[#allocation3 + $0x29c] sm:$0xf]
    %v291 = vld [vmem:[#allocation3 + $0x2a0] sm:$0xff]
    %v292 = vld [vmem:[#allocation3 + $0x2a8] sm:$0xf]
    %v293 = vld [vmem:[#allocation3 + $0x2ac] sm:$0xff]
    %v294 = vld [vmem:[#allocation3 + $0x2b4] sm:$0xf]
    %v295 = vld [vmem:[#allocation3 + $0x2b8] sm:$0xff]
    %v296 = vld [vmem:[#allocation3 + $0x2c0] sm:$0xf]
    %v297 = vld [vmem:[#allocation3 + $0x2c4] sm:$0xff]
    %v298 = vld [vmem:[#allocation3 + $0x2cc] sm:$0xf]
    %v299 = vld [vmem:[#allocation3 + $0x2d0] sm:$0xff]
    %v300 = vld [vmem:[#allocation3 + $0x2d8] sm:$0xf]
    %v301 = vld [vmem:[#allocation3 + $0x2dc] sm:$0xff]
    %v302 = vld [vmem:[#allocation3 + $0x2e4] sm:$0xf]
    %v303 = vld [vmem:[#allocation3 + $0x2e8] sm:$0xff]
    %v304 = vld [vmem:[#allocation3 + $0x2f0] sm:$0xf]
    %v305 = vld [vmem:[#allocation3 + $0x2f4] sm:$0xff]
    %v306 = vld [vmem:[#allocation3 + $0x2fc] sm:$0xf]
    %v307 = vld [vmem:[%s2] sm:$0x7]
    %v309 = vlaneseq
    %v310 = vshrl.u32 %v309, 7
    %v311 = vsub.s32 0, %v310
    %v312 = vrot.slane %v307, %v311
    %v313 = vlaneseq
    %v314 = vshrl.u32 %v313, 7
    %v315 = vsub.s32 1, %v314
    %v316 = vrot.slane %v307, %v315
    %v317 = vlaneseq
    %v318 = vshrl.u32 %v317, 7
    %v319 = vsub.s32 2, %v318
    %v320 = vrot.slane %v307, %v319
    %v326 = vunpack.c.l.b16 %v177
    %v327 = vunpack.c.h.b16 %v177
    %v328 = vunpack.c.l.b16 %v178
    %v329 = vunpack.c.h.b16 %v178
    %v330 = vpack.c.b16 %v326, %v326
    %v331 = vpack.c.b16 %v327, %v327
    %v332 = vpack.c.b16 %v328, %v328
    %v333 = vpack.c.b16 %v329, %v329
    %v466 = vunpack.c.l.b16 %v179
    %v467 = vunpack.c.h.b16 %v179
    %v468 = vunpack.c.l.b16 %v180
    %v469 = vunpack.c.l.b16 %v181
    %v470 = vunpack.c.h.b16 %v181
    %v471 = vunpack.c.l.b16 %v182
    %v472 = vunpack.c.l.b16 %v183
    %v473 = vunpack.c.h.b16 %v183
    %v474 = vunpack.c.l.b16 %v184
    %v475 = vunpack.c.l.b16 %v185
    %v476 = vunpack.c.h.b16 %v185
    %v477 = vunpack.c.l.b16 %v186
    %v478 = vunpack.c.l.b16 %v187
    %v479 = vunpack.c.h.b16 %v187
    %v480 = vunpack.c.l.b16 %v188
    %v481 = vunpack.c.l.b16 %v189
    %v482 = vunpack.c.h.b16 %v189
    %v483 = vunpack.c.l.b16 %v190
    %v484 = vunpack.c.l.b16 %v191
    %v485 = vunpack.c.h.b16 %v191
    %v486 = vunpack.c.l.b16 %v192
    %v487 = vunpack.c.l.b16 %v193
    %v488 = vunpack.c.h.b16 %v193
    %v489 = vunpack.c.l.b16 %v194
    %v490 = vunpack.c.l.b16 %v195
    %v491 = vunpack.c.h.b16 %v195
    %v492 = vunpack.c.l.b16 %v196
    %v493 = vunpack.c.l.b16 %v197
    %v494 = vunpack.c.h.b16 %v197
    %v495 = vunpack.c.l.b16 %v198
    %v496 = vunpack.c.l.b16 %v199
    %v497 = vunpack.c.h.b16 %v199
    %v498 = vunpack.c.l.b16 %v200
    %v499 = vunpack.c.l.b16 %v201
    %v500 = vunpack.c.h.b16 %v201
    %v501 = vunpack.c.l.b16 %v202
    %v502 = vunpack.c.l.b16 %v203
    %v503 = vunpack.c.h.b16 %v203
    %v504 = vunpack.c.l.b16 %v204
    %v505 = vunpack.c.l.b16 %v205
    %v506 = vunpack.c.h.b16 %v205
    %v507 = vunpack.c.l.b16 %v206
    %v508 = vunpack.c.l.b16 %v207
    %v509 = vunpack.c.h.b16 %v207
    %v510 = vunpack.c.l.b16 %v208
    %v511 = vunpack.c.l.b16 %v209
    %v512 = vunpack.c.h.b16 %v209
    %v513 = vunpack.c.l.b16 %v210
    %v514 = vunpack.c.l.b16 %v211
    %v515 = vunpack.c.h.b16 %v211
    %v516 = vunpack.c.l.b16 %v212
    %v517 = vunpack.c.l.b16 %v213
    %v518 = vunpack.c.h.b16 %v213
    %v519 = vunpack.c.l.b16 %v214
    %v520 = vunpack.c.l.b16 %v215
    %v521 = vunpack.c.h.b16 %v215
    %v522 = vunpack.c.l.b16 %v216
    %v523 = vunpack.c.l.b16 %v217
    %v524 = vunpack.c.h.b16 %v217
    %v525 = vunpack.c.l.b16 %v218
    %v526 = vunpack.c.l.b16 %v219
    %v527 = vunpack.c.h.b16 %v219
    %v528 = vunpack.c.l.b16 %v220
    %v529 = vunpack.c.l.b16 %v221
    %v530 = vunpack.c.h.b16 %v221
    %v531 = vunpack.c.l.b16 %v222
    %v532 = vunpack.c.l.b16 %v223
    %v533 = vunpack.c.h.b16 %v223
    %v534 = vunpack.c.l.b16 %v224
    %v535 = vunpack.c.l.b16 %v225
    %v536 = vunpack.c.h.b16 %v225
    %v537 = vunpack.c.l.b16 %v226
    %v538 = vunpack.c.l.b16 %v227
    %v539 = vunpack.c.h.b16 %v227
    %v540 = vunpack.c.l.b16 %v228
    %v541 = vunpack.c.l.b16 %v229
    %v542 = vunpack.c.h.b16 %v229
    %v543 = vunpack.c.l.b16 %v230
    %v544 = vunpack.c.l.b16 %v231
    %v545 = vunpack.c.h.b16 %v231
    %v546 = vunpack.c.l.b16 %v232
    %v547 = vunpack.c.l.b16 %v233
    %v548 = vunpack.c.h.b16 %v233
    %v549 = vunpack.c.l.b16 %v234
    %v550 = vunpack.c.l.b16 %v235
    %v551 = vunpack.c.h.b16 %v235
    %v552 = vunpack.c.l.b16 %v236
    %v553 = vunpack.c.l.b16 %v237
    %v554 = vunpack.c.h.b16 %v237
    %v555 = vunpack.c.l.b16 %v238
    %v556 = vunpack.c.l.b16 %v239
    %v557 = vunpack.c.h.b16 %v239
    %v558 = vunpack.c.l.b16 %v240
    %v559 = vunpack.c.l.b16 %v241
    %v560 = vunpack.c.h.b16 %v241
    %v561 = vunpack.c.l.b16 %v242
    %v562 = vunpack.c.l.b16 %v243
    %v563 = vunpack.c.h.b16 %v243
    %v564 = vunpack.c.l.b16 %v244
    %v565 = vunpack.c.l.b16 %v245
    %v566 = vunpack.c.h.b16 %v245
    %v567 = vunpack.c.l.b16 %v246
    %v568 = vunpack.c.l.b16 %v247
    %v569 = vunpack.c.h.b16 %v247
    %v570 = vunpack.c.l.b16 %v248
    %v571 = vunpack.c.l.b16 %v249
    %v572 = vunpack.c.h.b16 %v249
    %v573 = vunpack.c.l.b16 %v250
    %v574 = vunpack.c.l.b16 %v251
    %v575 = vunpack.c.h.b16 %v251
    %v576 = vunpack.c.l.b16 %v252
    %v577 = vunpack.c.l.b16 %v253
    %v578 = vunpack.c.h.b16 %v253
    %v579 = vunpack.c.l.b16 %v254
    %v580 = vunpack.c.l.b16 %v255
    %v581 = vunpack.c.h.b16 %v255
    %v582 = vunpack.c.l.b16 %v256
    %v583 = vunpack.c.l.b16 %v257
    %v584 = vunpack.c.h.b16 %v257
    %v585 = vunpack.c.l.b16 %v258
    %v586 = vunpack.c.l.b16 %v259
    %v587 = vunpack.c.h.b16 %v259
    %v588 = vunpack.c.l.b16 %v260
    %v589 = vunpack.c.l.b16 %v261
    %v590 = vunpack.c.h.b16 %v261
    %v591 = vunpack.c.l.b16 %v262
    %v592 = vunpack.c.l.b16 %v263
    %v593 = vunpack.c.h.b16 %v263
    %v594 = vunpack.c.l.b16 %v264
    %v595 = vunpack.c.l.b16 %v265
    %v596 = vunpack.c.h.b16 %v265
    %v597 = vunpack.c.l.b16 %v266
    %v598 = vunpack.c.l.b16 %v267
    %v599 = vunpack.c.h.b16 %v267
    %v600 = vunpack.c.l.b16 %v268
    %v601 = vunpack.c.l.b16 %v269
    %v602 = vunpack.c.h.b16 %v269
    %v603 = vunpack.c.l.b16 %v270
    %v604 = vunpack.c.l.b16 %v271
    %v605 = vunpack.c.h.b16 %v271
    %v606 = vunpack.c.l.b16 %v272
    %v607 = vunpack.c.l.b16 %v273
    %v608 = vunpack.c.h.b16 %v273
    %v609 = vunpack.c.l.b16 %v274
    %v610 = vunpack.c.l.b16 %v275
    %v611 = vunpack.c.h.b16 %v275
    %v612 = vunpack.c.l.b16 %v276
    %v613 = vunpack.c.l.b16 %v277
    %v614 = vunpack.c.h.b16 %v277
    %v615 = vunpack.c.l.b16 %v278
    %v616 = vunpack.c.l.b16 %v279
    %v617 = vunpack.c.h.b16 %v279
    %v618 = vunpack.c.l.b16 %v280
    %v619 = vunpack.c.l.b16 %v281
    %v620 = vunpack.c.h.b16 %v281
    %v621 = vunpack.c.l.b16 %v282
    %v622 = vunpack.c.l.b16 %v283
    %v623 = vunpack.c.h.b16 %v283
    %v624 = vunpack.c.l.b16 %v284
    %v625 = vunpack.c.l.b16 %v285
    %v626 = vunpack.c.h.b16 %v285
    %v627 = vunpack.c.l.b16 %v286
    %v628 = vunpack.c.l.b16 %v287
    %v629 = vunpack.c.h.b16 %v287
    %v630 = vunpack.c.l.b16 %v288
    %v631 = vunpack.c.l.b16 %v289
    %v632 = vunpack.c.h.b16 %v289
    %v633 = vunpack.c.l.b16 %v290
    %v634 = vunpack.c.l.b16 %v291
    %v635 = vunpack.c.h.b16 %v291
    %v636 = vunpack.c.l.b16 %v292
    %v637 = vunpack.c.l.b16 %v293
    %v638 = vunpack.c.h.b16 %v293
    %v639 = vunpack.c.l.b16 %v294
    %v640 = vunpack.c.l.b16 %v295
    %v641 = vunpack.c.h.b16 %v295
    %v642 = vunpack.c.l.b16 %v296
    %v643 = vunpack.c.l.b16 %v297
    %v644 = vunpack.c.h.b16 %v297
    %v645 = vunpack.c.l.b16 %v298
    %v646 = vunpack.c.l.b16 %v299
    %v647 = vunpack.c.h.b16 %v299
    %v648 = vunpack.c.l.b16 %v300
    %v649 = vunpack.c.l.b16 %v301
    %v650 = vunpack.c.h.b16 %v301
    %v651 = vunpack.c.l.b16 %v302
    %v652 = vunpack.c.l.b16 %v303
    %v653 = vunpack.c.h.b16 %v303
    %v654 = vunpack.c.l.b16 %v304
    %v655 = vunpack.c.l.b16 %v305
    %v656 = vunpack.c.h.b16 %v305
    %v657 = vunpack.c.l.b16 %v306
    %v658 = vpack.c.b16 %v469, %v466
    %v659 = vpack.c.b16 %v470, %v467
    %v660 = vpack.c.b16 %v471, %v468
    %v661 = vpack.c.b16 %v475, %v472
    %v662 = vpack.c.b16 %v476, %v473
    %v663 = vpack.c.b16 %v477, %v474
    %v664 = vpack.c.b16 %v481, %v478
    %v665 = vpack.c.b16 %v482, %v479
    %v666 = vpack.c.b16 %v483, %v480
    %v667 = vpack.c.b16 %v487, %v484
    %v668 = vpack.c.b16 %v488, %v485
    %v669 = vpack.c.b16 %v489, %v486
    %v670 = vpack.c.b16 %v493, %v490
    %v671 = vpack.c.b16 %v494, %v491
    %v672 = vpack.c.b16 %v495, %v492
    %v673 = vpack.c.b16 %v499, %v496
    %v674 = vpack.c.b16 %v500, %v497
    %v675 = vpack.c.b16 %v501, %v498
    %v676 = vpack.c.b16 %v505, %v502
    %v677 = vpack.c.b16 %v506, %v503
    %v678 = vpack.c.b16 %v507, %v504
    %v679 = vpack.c.b16 %v511, %v508
    %v680 = vpack.c.b16 %v512, %v509
    %v681 = vpack.c.b16 %v513, %v510
    %v682 = vpack.c.b16 %v517, %v514
    %v683 = vpack.c.b16 %v518, %v515
    %v684 = vpack.c.b16 %v519, %v516
    %v685 = vpack.c.b16 %v523, %v520
    %v686 = vpack.c.b16 %v524, %v521
    %v687 = vpack.c.b16 %v525, %v522
    %v688 = vpack.c.b16 %v529, %v526
    %v689 = vpack.c.b16 %v530, %v527
    %v690 = vpack.c.b16 %v531, %v528
    %v691 = vpack.c.b16 %v535, %v532
    %v692 = vpack.c.b16 %v536, %v533
    %v693 = vpack.c.b16 %v537, %v534
    %v694 = vpack.c.b16 %v541, %v538
    %v695 = vpack.c.b16 %v542, %v539
    %v696 = vpack.c.b16 %v543, %v540
    %v697 = vpack.c.b16 %v547, %v544
    %v698 = vpack.c.b16 %v548, %v545
    %v699 = vpack.c.b16 %v549, %v546
    %v700 = vpack.c.b16 %v553, %v550
    %v701 = vpack.c.b16 %v554, %v551
    %v702 = vpack.c.b16 %v555, %v552
    %v703 = vpack.c.b16 %v559, %v556
    %v704 = vpack.c.b16 %v560, %v557
    %v705 = vpack.c.b16 %v561, %v558
    %v706 = vpack.c.b16 %v565, %v562
    %v707 = vpack.c.b16 %v566, %v563
    %v708 = vpack.c.b16 %v567, %v564
    %v709 = vpack.c.b16 %v571, %v568
    %v710 = vpack.c.b16 %v572, %v569
    %v711 = vpack.c.b16 %v573, %v570
    %v712 = vpack.c.b16 %v577, %v574
    %v713 = vpack.c.b16 %v578, %v575
    %v714 = vpack.c.b16 %v579, %v576
    %v715 = vpack.c.b16 %v583, %v580
    %v716 = vpack.c.b16 %v584, %v581
    %v717 = vpack.c.b16 %v585, %v582
    %v718 = vpack.c.b16 %v589, %v586
    %v719 = vpack.c.b16 %v590, %v587
    %v720 = vpack.c.b16 %v591, %v588
    %v721 = vpack.c.b16 %v595, %v592
    %v722 = vpack.c.b16 %v596, %v593
    %v723 = vpack.c.b16 %v597, %v594
    %v724 = vpack.c.b16 %v601, %v598
    %v725 = vpack.c.b16 %v602, %v599
    %v726 = vpack.c.b16 %v603, %v600
    %v727 = vpack.c.b16 %v607, %v604
    %v728 = vpack.c.b16 %v608, %v605
    %v729 = vpack.c.b16 %v609, %v606
    %v730 = vpack.c.b16 %v613, %v610
    %v731 = vpack.c.b16 %v614, %v611
    %v732 = vpack.c.b16 %v615, %v612
    %v733 = vpack.c.b16 %v619, %v616
    %v734 = vpack.c.b16 %v620, %v617
    %v735 = vpack.c.b16 %v621, %v618
    %v736 = vpack.c.b16 %v625, %v622
    %v737 = vpack.c.b16 %v626, %v623
    %v738 = vpack.c.b16 %v627, %v624
    %v739 = vpack.c.b16 %v631, %v628
    %v740 = vpack.c.b16 %v632, %v629
    %v741 = vpack.c.b16 %v633, %v630
    %v742 = vpack.c.b16 %v637, %v634
    %v743 = vpack.c.b16 %v638, %v635
    %v744 = vpack.c.b16 %v639, %v636
    %v745 = vpack.c.b16 %v643, %v640
    %v746 = vpack.c.b16 %v644, %v641
    %v747 = vpack.c.b16 %v645, %v642
    %v748 = vpack.c.b16 %v649, %v646
    %v749 = vpack.c.b16 %v650, %v647
    %v750 = vpack.c.b16 %v651, %v648
    %v751 = vpack.c.b16 %v655, %v652
    %v752 = vpack.c.b16 %v656, %v653
    %v753 = vpack.c.b16 %v657, %v654
    %850 = vmatprep.subr.bf16.mxu0 %v659
    %851 = vmatpush1.bf16.msra.mxu0 %v658
    %852 = vmatprep.subr.bf16.mxu0 %v662
    %853 = vmatpush1.bf16.msra.mxu0 %v661
    %854 = vmatprep.subr.bf16.mxu0 %v665
    %855 = vmatpush1.bf16.msra.mxu0 %v664
    %856 = vmatprep.subr.bf16.mxu0 %v668
    %857 = vmatpush1.bf16.msra.mxu0 %v667
    %858 = vmatprep.subr.bf16.mxu0 %v671
    %859 = vmatpush1.bf16.msra.mxu0 %v670
    %860 = vmatprep.subr.bf16.mxu0 %v674
    %861 = vmatpush1.bf16.msra.mxu0 %v673
    %862 = vmatprep.subr.bf16.mxu0 %v677
    %863 = vmatpush1.bf16.msra.mxu0 %v676
    %864 = vmatprep.subr.bf16.mxu0 %v680
    %865 = vmatpush1.bf16.msra.mxu0 %v679
    %866 = vmatprep.subr.bf16.mxu0 %v683
    %867 = vmatpush1.bf16.msra.mxu0 %v682
    %868 = vmatprep.subr.bf16.mxu0 %v686
    %869 = vmatpush1.bf16.msra.mxu0 %v685
    %870 = vmatprep.subr.bf16.mxu0 %v689
    %871 = vmatpush1.bf16.msra.mxu0 %v688
    %872 = vmatprep.subr.bf16.mxu0 %v692
    %873 = vmatpush1.bf16.msra.mxu0 %v691
    %874 = vmatprep.subr.bf16.mxu0 %v695
    %875 = vmatpush1.bf16.msra.mxu0 %v694
    %876 = vmatprep.subr.bf16.mxu0 %v698
    %877 = vmatpush1.bf16.msra.mxu0 %v697
    %878 = vmatprep.subr.bf16.mxu0 %v701
    %879 = vmatpush1.bf16.msra.mxu0 %v700
    %880 = vmatprep.subr.bf16.mxu0 %v704
    %881 = vmatpush1.bf16.msra.mxu0 %v703
    %882 = vmatprep.mubr.bf16.mxu0 %v331
    %883 = vmatmul.mubr.bf16.gmra.mrb[0].mxu0 %v330
    %v884 = vpop.f32.mrb[0].mxu0
    %v885 = vadd.f32 %v312, %v884
    %v886 = vpop.f32.mrb[0].mxu0
    %v887 = vadd.f32 %v316, %v886
    %v888 = vpop.f32.mrb[0].mxu0
    %v889 = vpop.f32.mrb[0].mxu0
    %890 = vdwg.mxu0
    %891 = vmatprep.subr.bf16.mxu0 %v707
    %892 = vmatpush1.bf16.msra.mxu0 %v706
    %893 = vmatprep.subr.bf16.mxu0 %v710
    %894 = vmatpush1.bf16.msra.mxu0 %v709
    %895 = vmatprep.subr.bf16.mxu0 %v713
    %896 = vmatpush1.bf16.msra.mxu0 %v712
    %897 = vmatprep.subr.bf16.mxu0 %v716
    %898 = vmatpush1.bf16.msra.mxu0 %v715
    %899 = vmatprep.subr.bf16.mxu0 %v719
    %900 = vmatpush1.bf16.msra.mxu0 %v718
    %901 = vmatprep.subr.bf16.mxu0 %v722
    %902 = vmatpush1.bf16.msra.mxu0 %v721
    %903 = vmatprep.subr.bf16.mxu0 %v725
    %904 = vmatpush1.bf16.msra.mxu0 %v724
    %905 = vmatprep.subr.bf16.mxu0 %v728
    %906 = vmatpush1.bf16.msra.mxu0 %v727
    %907 = vmatprep.subr.bf16.mxu0 %v731
    %908 = vmatpush1.bf16.msra.mxu0 %v730
    %909 = vmatprep.subr.bf16.mxu0 %v734
    %910 = vmatpush1.bf16.msra.mxu0 %v733
    %911 = vmatprep.subr.bf16.mxu0 %v737
    %912 = vmatpush1.bf16.msra.mxu0 %v736
    %913 = vmatprep.subr.bf16.mxu0 %v740
    %914 = vmatpush1.bf16.msra.mxu0 %v739
    %915 = vmatprep.subr.bf16.mxu0 %v743
    %916 = vmatpush1.bf16.msra.mxu0 %v742
    %917 = vmatprep.subr.bf16.mxu0 %v746
    %918 = vmatpush1.bf16.msra.mxu0 %v745
    %919 = vmatprep.subr.bf16.mxu0 %v749
    %920 = vmatpush1.bf16.msra.mxu0 %v748
    %921 = vmatprep.subr.bf16.mxu0 %v752
    %922 = vmatpush1.bf16.msra.mxu0 %v751
    %923 = vmatprep.mubr.bf16.mxu0 %v333
    %924 = vmatmul.mubr.bf16.gmra.mrb[0].mxu0 %v332
    %v925 = vpop.f32.mrb[0].mxu0
    %v926 = vadd.f32 %v885, %v925
    %v927 = vpop.f32.mrb[0].mxu0
    %v928 = vadd.f32 %v887, %v927
    %v929 = vpop.f32.mrb[0].mxu0
    %v930 = vpop.f32.mrb[0].mxu0
    %931 = vdwg.mxu0
    %932 = vmatprep.subr.bf16.mxu0 0
    %933 = vmatpush1.bf16.msra.mxu0 %v660
    %934 = vmatprep.subr.bf16.mxu0 0
    %935 = vmatpush1.bf16.msra.mxu0 %v663
    %936 = vmatprep.subr.bf16.mxu0 0
    %937 = vmatpush1.bf16.msra.mxu0 %v666
    %938 = vmatprep.subr.bf16.mxu0 0
    %939 = vmatpush1.bf16.msra.mxu0 %v669
    %940 = vmatprep.subr.bf16.mxu0 0
    %941 = vmatpush1.bf16.msra.mxu0 %v672
    %942 = vmatprep.subr.bf16.mxu0 0
    %943 = vmatpush1.bf16.msra.mxu0 %v675
    %944 = vmatprep.subr.bf16.mxu0 0
    %945 = vmatpush1.bf16.msra.mxu0 %v678
    %946 = vmatprep.subr.bf16.mxu0 0
    %947 = vmatpush1.bf16.msra.mxu0 %v681
    %948 = vmatprep.subr.bf16.mxu0 0
    %949 = vmatpush1.bf16.msra.mxu0 %v684
    %950 = vmatprep.subr.bf16.mxu0 0
    %951 = vmatpush1.bf16.msra.mxu0 %v687
    %952 = vmatprep.subr.bf16.mxu0 0
    %953 = vmatpush1.bf16.msra.mxu0 %v690
    %954 = vmatprep.subr.bf16.mxu0 0
    %955 = vmatpush1.bf16.msra.mxu0 %v693
    %956 = vmatprep.subr.bf16.mxu0 0
    %957 = vmatpush1.bf16.msra.mxu0 %v696
    %958 = vmatprep.subr.bf16.mxu0 0
    %959 = vmatpush1.bf16.msra.mxu0 %v699
    %960 = vmatprep.subr.bf16.mxu0 0
    %961 = vmatpush1.bf16.msra.mxu0 %v702
    %962 = vmatprep.subr.bf16.mxu0 0
    %963 = vmatpush1.bf16.msra.mxu0 %v705
    %964 = vmatprep.mubr.bf16.mxu0 %v331
    %965 = vmatmul.mubr.bf16.gmra.mrb[0].mxu0 %v330
    %v966 = vpop.f32.mrb[0].mxu0
    %v967 = vadd.f32 %v320, %v966
    %v968 = vpop.f32.mrb[0].mxu0
    %v969 = vpop.f32.mrb[0].mxu0
    %v970 = vpop.f32.mrb[0].mxu0
    %971 = vdwg.mxu0
    %972 = vmatprep.subr.bf16.mxu0 0
    %973 = vmatpush1.bf16.msra.mxu0 %v708
    %974 = vmatprep.subr.bf16.mxu0 0
    %975 = vmatpush1.bf16.msra.mxu0 %v711
    %976 = vmatprep.subr.bf16.mxu0 0
    %977 = vmatpush1.bf16.msra.mxu0 %v714
    %978 = vmatprep.subr.bf16.mxu0 0
    %979 = vmatpush1.bf16.msra.mxu0 %v717
    %980 = vmatprep.subr.bf16.mxu0 0
    %981 = vmatpush1.bf16.msra.mxu0 %v720
    %982 = vmatprep.subr.bf16.mxu0 0
    %983 = vmatpush1.bf16.msra.mxu0 %v723
    %984 = vmatprep.subr.bf16.mxu0 0
    %985 = vmatpush1.bf16.msra.mxu0 %v726
    %986 = vmatprep.subr.bf16.mxu0 0
    %987 = vmatpush1.bf16.msra.mxu0 %v729
    %988 = vmatprep.subr.bf16.mxu0 0
    %989 = vmatpush1.bf16.msra.mxu0 %v732
    %990 = vmatprep.subr.bf16.mxu0 0
    %991 = vmatpush1.bf16.msra.mxu0 %v735
    %992 = vmatprep.subr.bf16.mxu0 0
    %993 = vmatpush1.bf16.msra.mxu0 %v738
    %994 = vmatprep.subr.bf16.mxu0 0
    %995 = vmatpush1.bf16.msra.mxu0 %v741
    %996 = vmatprep.subr.bf16.mxu0 0
    %997 = vmatpush1.bf16.msra.mxu0 %v744
    %998 = vmatprep.subr.bf16.mxu0 0
    %999 = vmatpush1.bf16.msra.mxu0 %v747
    %1000 = vmatprep.subr.bf16.mxu0 0
    %1001 = vmatpush1.bf16.msra.mxu0 %v750
    %1002 = vmatprep.subr.bf16.mxu0 0
    %1003 = vmatpush1.bf16.msra.mxu0 %v753
    %1004 = vmatprep.mubr.bf16.mxu0 %v333
    %1005 = vmatmul.mubr.bf16.gmra.mrb[0].mxu0 %v332
    %v1006 = vpop.f32.mrb[0].mxu0
    %v1007 = vadd.f32 %v967, %v1006
    %v1008 = vpop.f32.mrb[0].mxu0
    %v1009 = vpop.f32.mrb[0].mxu0
    %v1010 = vpop.f32.mrb[0].mxu0
    %1011 = vdwg.mxu0
    %v1012 = vmax.f32 %v926, 0.0
    %v1013 = vmax.f32 %v928, 0.0
    %v1014 = vmax.f32 %v1007, 0.0
    %v1015 = vpack.c.bf16 %v1012, %v1012
    %v1016 = vpack.c.bf16 %v1013, %v1013
    %v1017 = vpack.c.bf16 %v1014, %v1014
    %v1018 = vld [vmem:[#allocation5] sm:$0xff]
    %v1019 = vld [vmem:[#allocation5 + $0x8] sm:$0xff]
    %v1020 = vld [vmem:[#allocation5 + $0x10] sm:$0xff]
    %v1021 = vld [vmem:[#allocation5 + $0x18] sm:$0xff]
    %v1022 = vld [vmem:[#allocation5 + $0x20] sm:$0xff]
    %v1023 = vld [vmem:[#allocation5 + $0x28] sm:$0xff]
    %v1024 = vld [vmem:[#allocation5 + $0x30] sm:$0xff]
    %v1025 = vld [vmem:[#allocation5 + $0x38] sm:$0xff]
    %v1026 = vld [vmem:[#allocation5 + $0x40] sm:$0xff]
    %v1027 = vld [vmem:[#allocation5 + $0x48] sm:$0xff]
    %v1028 = vld [vmem:[#allocation5 + $0x50] sm:$0xff]
    %v1029 = vld [vmem:[#allocation5 + $0x58] sm:$0xff]
    %v1030 = vld [vmem:[#allocation5 + $0x60] sm:$0xff]
    %v1031 = vld [vmem:[#allocation5 + $0x68] sm:$0xff]
    %v1032 = vld [vmem:[#allocation5 + $0x70] sm:$0xff]
    %v1033 = vld [vmem:[#allocation5 + $0x78] sm:$0xff]
    %v1034 = vld [vmem:[#allocation5 + $0x80] sm:$0xff]
    %v1035 = vld [vmem:[#allocation5 + $0x88] sm:$0xff]
    %v1036 = vld [vmem:[#allocation5 + $0x90] sm:$0xff]
    %v1037 = vld [vmem:[#allocation5 + $0x98] sm:$0xff]
    %v1038 = vld [vmem:[#allocation5 + $0xa0] sm:$0xff]
    %v1039 = vld [vmem:[#allocation5 + $0xa8] sm:$0xff]
    %v1040 = vld [vmem:[#allocation5 + $0xb0] sm:$0xff]
    %v1041 = vld [vmem:[#allocation5 + $0xb8] sm:$0xff]
    %v1042 = vld [vmem:[#allocation5 + $0xc0] sm:$0xff]
    %v1043 = vld [vmem:[#allocation5 + $0xc8] sm:$0xff]
    %v1044 = vld [vmem:[#allocation5 + $0xd0] sm:$0xff]
    %v1045 = vld [vmem:[#allocation5 + $0xd8] sm:$0xff]
    %v1046 = vld [vmem:[#allocation5 + $0xe0] sm:$0xff]
    %v1047 = vld [vmem:[#allocation5 + $0xe8] sm:$0xff]
    %v1048 = vld [vmem:[#allocation5 + $0xf0] sm:$0xff]
    %v1049 = vld [vmem:[#allocation5 + $0xf8] sm:$0xff]
    %v1050 = vld [vmem:[#allocation5 + $0x100] sm:$0xff]
    %v1051 = vld [vmem:[#allocation5 + $0x108] sm:$0xff]
    %v1052 = vld [vmem:[#allocation5 + $0x110] sm:$0xff]
    %v1053 = vld [vmem:[#allocation5 + $0x118] sm:$0xff]
    %v1054 = vld [vmem:[#allocation5 + $0x120] sm:$0xff]
    %v1055 = vld [vmem:[#allocation5 + $0x128] sm:$0xff]
    %v1056 = vld [vmem:[#allocation5 + $0x130] sm:$0xff]
    %v1057 = vld [vmem:[#allocation5 + $0x138] sm:$0xff]
    %v1058 = vld [vmem:[#allocation5 + $0x140] sm:$0xff]
    %v1059 = vld [vmem:[#allocation5 + $0x148] sm:$0xff]
    %v1060 = vld [vmem:[#allocation5 + $0x150] sm:$0xff]
    %v1061 = vld [vmem:[#allocation5 + $0x158] sm:$0xff]
    %v1062 = vld [vmem:[#allocation5 + $0x160] sm:$0xff]
    %v1063 = vld [vmem:[#allocation5 + $0x168] sm:$0xff]
    %v1064 = vld [vmem:[#allocation5 + $0x170] sm:$0xff]
    %v1065 = vld [vmem:[#allocation5 + $0x178] sm:$0xff]
    %v1066 = vld [vmem:[#allocation7] sm:$0x3]
    %v1068 = vlaneseq
    %v1069 = vshrl.u32 %v1068, 7
    %v1070 = vsub.s32 0, %v1069
    %v1071 = vrot.slane %v1066, %v1070
    %v1072 = vlaneseq
    %v1073 = vshrl.u32 %v1072, 7
    %v1074 = vsub.s32 1, %v1073
    %v1075 = vrot.slane %v1066, %v1074
    %v1126 = vunpack.c.l.b16 %v1018
    %v1127 = vunpack.c.h.b16 %v1018
    %v1128 = vunpack.c.l.b16 %v1019
    %v1129 = vunpack.c.h.b16 %v1019
    %v1130 = vunpack.c.l.b16 %v1020
    %v1131 = vunpack.c.h.b16 %v1020
    %v1132 = vunpack.c.l.b16 %v1021
    %v1133 = vunpack.c.h.b16 %v1021
    %v1134 = vunpack.c.l.b16 %v1022
    %v1135 = vunpack.c.h.b16 %v1022
    %v1136 = vunpack.c.l.b16 %v1023
    %v1137 = vunpack.c.h.b16 %v1023
    %v1138 = vunpack.c.l.b16 %v1024
    %v1139 = vunpack.c.h.b16 %v1024
    %v1140 = vunpack.c.l.b16 %v1025
    %v1141 = vunpack.c.h.b16 %v1025
    %v1142 = vunpack.c.l.b16 %v1026
    %v1143 = vunpack.c.h.b16 %v1026
    %v1144 = vunpack.c.l.b16 %v1027
    %v1145 = vunpack.c.h.b16 %v1027
    %v1146 = vunpack.c.l.b16 %v1028
    %v1147 = vunpack.c.h.b16 %v1028
    %v1148 = vunpack.c.l.b16 %v1029
    %v1149 = vunpack.c.h.b16 %v1029
    %v1150 = vunpack.c.l.b16 %v1030
    %v1151 = vunpack.c.h.b16 %v1030
    %v1152 = vunpack.c.l.b16 %v1031
    %v1153 = vunpack.c.h.b16 %v1031
    %v1154 = vunpack.c.l.b16 %v1032
    %v1155 = vunpack.c.h.b16 %v1032
    %v1156 = vunpack.c.l.b16 %v1033
    %v1157 = vunpack.c.h.b16 %v1033
    %v1158 = vunpack.c.l.b16 %v1034
    %v1159 = vunpack.c.h.b16 %v1034
    %v1160 = vunpack.c.l.b16 %v1035
    %v1161 = vunpack.c.h.b16 %v1035
    %v1162 = vunpack.c.l.b16 %v1036
    %v1163 = vunpack.c.h.b16 %v1036
    %v1164 = vunpack.c.l.b16 %v1037
    %v1165 = vunpack.c.h.b16 %v1037
    %v1166 = vunpack.c.l.b16 %v1038
    %v1167 = vunpack.c.h.b16 %v1038
    %v1168 = vunpack.c.l.b16 %v1039
    %v1169 = vunpack.c.h.b16 %v1039
    %v1170 = vunpack.c.l.b16 %v1040
    %v1171 = vunpack.c.h.b16 %v1040
    %v1172 = vunpack.c.l.b16 %v1041
    %v1173 = vunpack.c.h.b16 %v1041
    %v1174 = vunpack.c.l.b16 %v1042
    %v1175 = vunpack.c.h.b16 %v1042
    %v1176 = vunpack.c.l.b16 %v1043
    %v1177 = vunpack.c.h.b16 %v1043
    %v1178 = vunpack.c.l.b16 %v1044
    %v1179 = vunpack.c.h.b16 %v1044
    %v1180 = vunpack.c.l.b16 %v1045
    %v1181 = vunpack.c.h.b16 %v1045
    %v1182 = vunpack.c.l.b16 %v1046
    %v1183 = vunpack.c.h.b16 %v1046
    %v1184 = vunpack.c.l.b16 %v1047
    %v1185 = vunpack.c.h.b16 %v1047
    %v1186 = vunpack.c.l.b16 %v1048
    %v1187 = vunpack.c.h.b16 %v1048
    %v1188 = vunpack.c.l.b16 %v1049
    %v1189 = vunpack.c.h.b16 %v1049
    %v1190 = vunpack.c.l.b16 %v1050
    %v1191 = vunpack.c.h.b16 %v1050
    %v1192 = vunpack.c.l.b16 %v1051
    %v1193 = vunpack.c.h.b16 %v1051
    %v1194 = vunpack.c.l.b16 %v1052
    %v1195 = vunpack.c.h.b16 %v1052
    %v1196 = vunpack.c.l.b16 %v1053
    %v1197 = vunpack.c.h.b16 %v1053
    %v1198 = vunpack.c.l.b16 %v1054
    %v1199 = vunpack.c.h.b16 %v1054
    %v1200 = vunpack.c.l.b16 %v1055
    %v1201 = vunpack.c.h.b16 %v1055
    %v1202 = vunpack.c.l.b16 %v1056
    %v1203 = vunpack.c.h.b16 %v1056
    %v1204 = vunpack.c.l.b16 %v1057
    %v1205 = vunpack.c.h.b16 %v1057
    %v1206 = vunpack.c.l.b16 %v1058
    %v1207 = vunpack.c.h.b16 %v1058
    %v1208 = vunpack.c.l.b16 %v1059
    %v1209 = vunpack.c.h.b16 %v1059
    %v1210 = vunpack.c.l.b16 %v1060
    %v1211 = vunpack.c.h.b16 %v1060
    %v1212 = vunpack.c.l.b16 %v1061
    %v1213 = vunpack.c.h.b16 %v1061
    %v1214 = vunpack.c.l.b16 %v1062
    %v1215 = vunpack.c.h.b16 %v1062
    %v1216 = vunpack.c.l.b16 %v1063
    %v1217 = vunpack.c.h.b16 %v1063
    %v1218 = vunpack.c.l.b16 %v1064
    %v1219 = vunpack.c.h.b16 %v1064
    %v1220 = vunpack.c.l.b16 %v1065
    %v1221 = vunpack.c.h.b16 %v1065
    %v1222 = vpack.c.b16 %v1128, %v1126
    %v1223 = vpack.c.b16 %v1129, %v1127
    %v1224 = vpack.c.b16 %v1132, %v1130
    %v1225 = vpack.c.b16 %v1133, %v1131
    %v1226 = vpack.c.b16 %v1136, %v1134
    %v1227 = vpack.c.b16 %v1137, %v1135
    %v1228 = vpack.c.b16 %v1140, %v1138
    %v1229 = vpack.c.b16 %v1141, %v1139
    %v1230 = vpack.c.b16 %v1144, %v1142
    %v1231 = vpack.c.b16 %v1145, %v1143
    %v1232 = vpack.c.b16 %v1148, %v1146
    %v1233 = vpack.c.b16 %v1149, %v1147
    %v1234 = vpack.c.b16 %v1152, %v1150
    %v1235 = vpack.c.b16 %v1153, %v1151
    %v1236 = vpack.c.b16 %v1156, %v1154
    %v1237 = vpack.c.b16 %v1157, %v1155
    %v1238 = vpack.c.b16 %v1160, %v1158
    %v1239 = vpack.c.b16 %v1161, %v1159
    %v1240 = vpack.c.b16 %v1164, %v1162
    %v1241 = vpack.c.b16 %v1165, %v1163
    %v1242 = vpack.c.b16 %v1168, %v1166
    %v1243 = vpack.c.b16 %v1169, %v1167
    %v1244 = vpack.c.b16 %v1172, %v1170
    %v1245 = vpack.c.b16 %v1173, %v1171
    %v1246 = vpack.c.b16 %v1176, %v1174
    %v1247 = vpack.c.b16 %v1177, %v1175
    %v1248 = vpack.c.b16 %v1180, %v1178
    %v1249 = vpack.c.b16 %v1181, %v1179
    %v1250 = vpack.c.b16 %v1184, %v1182
    %v1251 = vpack.c.b16 %v1185, %v1183
    %v1252 = vpack.c.b16 %v1188, %v1186
    %v1253 = vpack.c.b16 %v1189, %v1187
    %v1254 = vpack.c.b16 %v1192, %v1190
    %v1255 = vpack.c.b16 %v1193, %v1191
    %v1256 = vpack.c.b16 %v1196, %v1194
    %v1257 = vpack.c.b16 %v1197, %v1195
    %v1258 = vpack.c.b16 %v1200, %v1198
    %v1259 = vpack.c.b16 %v1201, %v1199
    %v1260 = vpack.c.b16 %v1204, %v1202
    %v1261 = vpack.c.b16 %v1205, %v1203
    %v1262 = vpack.c.b16 %v1208, %v1206
    %v1263 = vpack.c.b16 %v1209, %v1207
    %v1264 = vpack.c.b16 %v1212, %v1210
    %v1265 = vpack.c.b16 %v1213, %v1211
    %v1266 = vpack.c.b16 %v1216, %v1214
    %v1267 = vpack.c.b16 %v1217, %v1215
    %v1268 = vpack.c.b16 %v1220, %v1218
    %v1269 = vpack.c.b16 %v1221, %v1219
    %1318 = vmatprep.subr.bf16.mxu0 %v1223
    %1319 = vmatpush1.bf16.msra.mxu0 %v1222
    %1320 = vmatprep.subr.bf16.mxu0 %v1225
    %1321 = vmatpush1.bf16.msra.mxu0 %v1224
    %1322 = vmatprep.subr.bf16.mxu0 %v1227
    %1323 = vmatpush1.bf16.msra.mxu0 %v1226
    %1324 = vmatprep.subr.bf16.mxu0 %v1229
    %1325 = vmatpush1.bf16.msra.mxu0 %v1228
    %1326 = vmatprep.subr.bf16.mxu0 %v1231
    %1327 = vmatpush1.bf16.msra.mxu0 %v1230
    %1328 = vmatprep.subr.bf16.mxu0 %v1233
    %1329 = vmatpush1.bf16.msra.mxu0 %v1232
    %1330 = vmatprep.subr.bf16.mxu0 %v1235
    %1331 = vmatpush1.bf16.msra.mxu0 %v1234
    %1332 = vmatprep.subr.bf16.mxu0 %v1237
    %1333 = vmatpush1.bf16.msra.mxu0 %v1236
    %1334 = vmatprep.subr.bf16.mxu0 %v1239
    %1335 = vmatpush1.bf16.msra.mxu0 %v1238
    %1336 = vmatprep.subr.bf16.mxu0 %v1241
    %1337 = vmatpush1.bf16.msra.mxu0 %v1240
    %1338 = vmatprep.subr.bf16.mxu0 %v1243
    %1339 = vmatpush1.bf16.msra.mxu0 %v1242
    %1340 = vmatprep.subr.bf16.mxu0 %v1245
    %1341 = vmatpush1.bf16.msra.mxu0 %v1244
    %1342 = vmatprep.subr.bf16.mxu0 %v1247
    %1343 = vmatpush1.bf16.msra.mxu0 %v1246
    %1344 = vmatprep.subr.bf16.mxu0 %v1249
    %1345 = vmatpush1.bf16.msra.mxu0 %v1248
    %1346 = vmatprep.subr.bf16.mxu0 %v1251
    %1347 = vmatpush1.bf16.msra.mxu0 %v1250
    %1348 = vmatprep.subr.bf16.mxu0 %v1253
    %1349 = vmatpush1.bf16.msra.mxu0 %v1252
    %1350 = vmatprep.mubr.bf16.mxu0 %v1016
    %1351 = vmatmul.mubr.bf16.gmra.mrb[0].mxu0 %v1015
    %v1352 = vpop.f32.mrb[0].mxu0
    %v1353 = vadd.f32 %v1071, %v1352
    %v1354 = vpop.f32.mrb[0].mxu0
    %v1355 = vadd.f32 %v1075, %v1354
    %v1356 = vpop.f32.mrb[0].mxu0
    %v1357 = vpop.f32.mrb[0].mxu0
    %1358 = vdwg.mxu0
    %1359 = vmatprep.subr.bf16.mxu0 %v1255
    %1360 = vmatpush1.bf16.msra.mxu0 %v1254
    %1361 = vmatprep.subr.bf16.mxu0 %v1257
    %1362 = vmatpush1.bf16.msra.mxu0 %v1256
    %1363 = vmatprep.subr.bf16.mxu0 %v1259
    %1364 = vmatpush1.bf16.msra.mxu0 %v1258
    %1365 = vmatprep.subr.bf16.mxu0 %v1261
    %1366 = vmatpush1.bf16.msra.mxu0 %v1260
    %1367 = vmatprep.subr.bf16.mxu0 %v1263
    %1368 = vmatpush1.bf16.msra.mxu0 %v1262
    %1369 = vmatprep.subr.bf16.mxu0 %v1265
    %1370 = vmatpush1.bf16.msra.mxu0 %v1264
    %1371 = vmatprep.subr.bf16.mxu0 %v1267
    %1372 = vmatpush1.bf16.msra.mxu0 %v1266
    %1373 = vmatprep.subr.bf16.mxu0 %v1269
    %1374 = vmatpush1.bf16.msra.mxu0 %v1268
    %1375 = vmatprep.subr.bf16.mxu0 0
    %1376 = vmatpush1.bf16.msra.mxu0 0
    %1377 = vmatprep.subr.bf16.mxu0 0
    %1378 = vmatpush1.bf16.msra.mxu0 0
    %1379 = vmatprep.subr.bf16.mxu0 0
    %1380 = vmatpush1.bf16.msra.mxu0 0
    %1381 = vmatprep.subr.bf16.mxu0 0
    %1382 = vmatpush1.bf16.msra.mxu0 0
    %1383 = vmatprep.subr.bf16.mxu0 0
    %1384 = vmatpush1.bf16.msra.mxu0 0
    %1385 = vmatprep.subr.bf16.mxu0 0
    %1386 = vmatpush1.bf16.msra.mxu0 0
    %1387 = vmatprep.subr.bf16.mxu0 0
    %1388 = vmatpush1.bf16.msra.mxu0 0
    %1389 = vmatprep.subr.bf16.mxu0 0
    %1390 = vmatpush1.bf16.msra.mxu0 0
    %1391 = vmatprep.mubr.bf16.mxu0 0
    %1392 = vmatmul.mubr.bf16.gmra.mrb[0].mxu0 %v1017
    %v1393 = vpop.f32.mrb[0].mxu0
    %v1394 = vadd.f32 %v1353, %v1393
    %v1395 = vpop.f32.mrb[0].mxu0
    %v1396 = vadd.f32 %v1355, %v1395
    %v1397 = vpop.f32.mrb[0].mxu0
    %v1398 = vpop.f32.mrb[0].mxu0
    %1399 = vdwg.mxu0
    %v1400 = vmax.f32 %v1394, 0.0
    %v1401 = vmax.f32 %v1396, 0.0
    %v1402 = vpack.c.bf16 %v1400, %v1400
    %v1403 = vpack.c.bf16 %v1401, %v1401
    %v1404 = vld [vmem:[#allocation8] sm:$0xf]
    %v1405 = vld [vmem:[#allocation8 + $0x4] sm:$0xf]
    %v1406 = vld [vmem:[#allocation8 + $0x8] sm:$0xf]
    %v1407 = vld [vmem:[#allocation8 + $0xc] sm:$0xf]
    %v1408 = vld [vmem:[#allocation8 + $0x10] sm:$0xf]
    %v1409 = vld [vmem:[#allocation8 + $0x14] sm:$0xf]
    %v1410 = vld [vmem:[#allocation8 + $0x18] sm:$0xf]
    %v1411 = vld [vmem:[#allocation8 + $0x1c] sm:$0xf]
    %v1412 = vld [vmem:[#allocation8 + $0x20] sm:$0xf]
    %v1413 = vld [vmem:[#allocation8 + $0x24] sm:$0xf]
    %v1414 = vld [vmem:[#allocation8 + $0x28] sm:$0xf]
    %v1415 = vld [vmem:[#allocation8 + $0x2c] sm:$0xf]
    %v1416 = vld [vmem:[#allocation8 + $0x30] sm:$0xf]
    %v1417 = vld [vmem:[#allocation8 + $0x34] sm:$0xf]
    %v1418 = vld [vmem:[#allocation8 + $0x38] sm:$0xf]
    %v1419 = vld [vmem:[#allocation8 + $0x3c] sm:$0xf]
    %v1420 = vld [vmem:[#allocation8 + $0x40] sm:$0xf]
    %v1421 = vld [vmem:[#allocation8 + $0x44] sm:$0xf]
    %v1422 = vld [vmem:[#allocation8 + $0x48] sm:$0xf]
    %v1423 = vld [vmem:[#allocation8 + $0x4c] sm:$0xf]
    %v1424 = vld [vmem:[#allocation8 + $0x50] sm:$0xf]
    %v1425 = vld [vmem:[#allocation8 + $0x54] sm:$0xf]
    %v1426 = vld [vmem:[#allocation8 + $0x58] sm:$0xf]
    %v1427 = vld [vmem:[#allocation8 + $0x5c] sm:$0xf]
    %v1428 = vld [vmem:[#allocation8 + $0x60] sm:$0xf]
    %v1429 = vld [vmem:[#allocation8 + $0x64] sm:$0xf]
    %v1430 = vld [vmem:[#allocation8 + $0x68] sm:$0xf]
    %v1431 = vld [vmem:[#allocation8 + $0x6c] sm:$0xf]
    %v1432 = vld [vmem:[#allocation8 + $0x70] sm:$0xf]
    %v1433 = vld [vmem:[#allocation8 + $0x74] sm:$0xf]
    %v1434 = vld [vmem:[#allocation8 + $0x78] sm:$0xf]
    %v1435 = vld [vmem:[#allocation8 + $0x7c] sm:$0xf]
    %v1436 = vld [vmem:[#allocation10] sm:$0x1]
    %v1438 = vlaneseq
    %v1439 = vshrl.u32 %v1438, 7
    %v1440 = vsub.s32 0, %v1439
    %v1441 = vrot.slane %v1436, %v1440
    %v1475 = vunpack.c.l.b16 %v1404
    %v1476 = vunpack.c.l.b16 %v1405
    %v1477 = vunpack.c.l.b16 %v1406
    %v1478 = vunpack.c.l.b16 %v1407
    %v1479 = vunpack.c.l.b16 %v1408
    %v1480 = vunpack.c.l.b16 %v1409
    %v1481 = vunpack.c.l.b16 %v1410
    %v1482 = vunpack.c.l.b16 %v1411
    %v1483 = vunpack.c.l.b16 %v1412
    %v1484 = vunpack.c.l.b16 %v1413
    %v1485 = vunpack.c.l.b16 %v1414
    %v1486 = vunpack.c.l.b16 %v1415
    %v1487 = vunpack.c.l.b16 %v1416
    %v1488 = vunpack.c.l.b16 %v1417
    %v1489 = vunpack.c.l.b16 %v1418
    %v1490 = vunpack.c.l.b16 %v1419
    %v1491 = vunpack.c.l.b16 %v1420
    %v1492 = vunpack.c.l.b16 %v1421
    %v1493 = vunpack.c.l.b16 %v1422
    %v1494 = vunpack.c.l.b16 %v1423
    %v1495 = vunpack.c.l.b16 %v1424
    %v1496 = vunpack.c.l.b16 %v1425
    %v1497 = vunpack.c.l.b16 %v1426
    %v1498 = vunpack.c.l.b16 %v1427
    %v1499 = vunpack.c.l.b16 %v1428
    %v1500 = vunpack.c.l.b16 %v1429
    %v1501 = vunpack.c.l.b16 %v1430
    %v1502 = vunpack.c.l.b16 %v1431
    %v1503 = vunpack.c.l.b16 %v1432
    %v1504 = vunpack.c.l.b16 %v1433
    %v1505 = vunpack.c.l.b16 %v1434
    %v1506 = vunpack.c.l.b16 %v1435
    %v1507 = vpack.c.b16 %v1476, %v1475
    %v1508 = vpack.c.b16 %v1478, %v1477
    %v1509 = vpack.c.b16 %v1480, %v1479
    %v1510 = vpack.c.b16 %v1482, %v1481
    %v1511 = vpack.c.b16 %v1484, %v1483
    %v1512 = vpack.c.b16 %v1486, %v1485
    %v1513 = vpack.c.b16 %v1488, %v1487
    %v1514 = vpack.c.b16 %v1490, %v1489
    %v1515 = vpack.c.b16 %v1492, %v1491
    %v1516 = vpack.c.b16 %v1494, %v1493
    %v1517 = vpack.c.b16 %v1496, %v1495
    %v1518 = vpack.c.b16 %v1498, %v1497
    %v1519 = vpack.c.b16 %v1500, %v1499
    %v1520 = vpack.c.b16 %v1502, %v1501
    %v1521 = vpack.c.b16 %v1504, %v1503
    %v1522 = vpack.c.b16 %v1506, %v1505
    %1539 = vmatprep.subr.bf16.mxu0 0
    %1540 = vmatpush1.bf16.msra.mxu0 %v1507
    %1541 = vmatprep.subr.bf16.mxu0 0
    %1542 = vmatpush1.bf16.msra.mxu0 %v1508
    %1543 = vmatprep.subr.bf16.mxu0 0
    %1544 = vmatpush1.bf16.msra.mxu0 %v1509
    %1545 = vmatprep.subr.bf16.mxu0 0
    %1546 = vmatpush1.bf16.msra.mxu0 %v1510
    %1547 = vmatprep.subr.bf16.mxu0 0
    %1548 = vmatpush1.bf16.msra.mxu0 %v1511
    %1549 = vmatprep.subr.bf16.mxu0 0
    %1550 = vmatpush1.bf16.msra.mxu0 %v1512
    %1551 = vmatprep.subr.bf16.mxu0 0
    %1552 = vmatpush1.bf16.msra.mxu0 %v1513
    %1553 = vmatprep.subr.bf16.mxu0 0
    %1554 = vmatpush1.bf16.msra.mxu0 %v1514
    %1555 = vmatprep.subr.bf16.mxu0 0
    %1556 = vmatpush1.bf16.msra.mxu0 %v1515
    %1557 = vmatprep.subr.bf16.mxu0 0
    %1558 = vmatpush1.bf16.msra.mxu0 %v1516
    %1559 = vmatprep.subr.bf16.mxu0 0
    %1560 = vmatpush1.bf16.msra.mxu0 %v1517
    %1561 = vmatprep.subr.bf16.mxu0 0
    %1562 = vmatpush1.bf16.msra.mxu0 %v1518
    %1563 = vmatprep.subr.bf16.mxu0 0
    %1564 = vmatpush1.bf16.msra.mxu0 %v1519
    %1565 = vmatprep.subr.bf16.mxu0 0
    %1566 = vmatpush1.bf16.msra.mxu0 %v1520
    %1567 = vmatprep.subr.bf16.mxu0 0
    %1568 = vmatpush1.bf16.msra.mxu0 %v1521
    %1569 = vmatprep.subr.bf16.mxu0 0
    %1570 = vmatpush1.bf16.msra.mxu0 %v1522
    %1571 = vmatprep.mubr.bf16.mxu0 %v1403
    %1572 = vmatmul.mubr.bf16.gmra.mrb[0].mxu0 %v1402
    %v1573 = vpop.f32.mrb[0].mxu0
    %v1574 = vadd.f32 %v1441, %v1573
    %v1575 = vpop.f32.mrb[0].mxu0
    %v1576 = vpop.f32.mrb[0].mxu0
    %v1577 = vpop.f32.mrb[0].mxu0
    %1578 = vdwg.mxu0
    %v1579 = vmax.f32 %v1574, 0.0
    %v1580 = vpack.c.bf16 %v1579, %v1579
    %v1581 = vld [vmem:[%s7] sm:$0xf]
    %v1582 = vld [vmem:[%s7 + $0x4] sm:$0xf]
    %v1583 = vld [vmem:[%s7 + $0x8] sm:$0xf]
    %v1584 = vld [vmem:[%s7 + $0xc] sm:$0xf]
    %v1585 = vld [vmem:[%s7 + $0x10] sm:$0xf]
    %v1586 = vld [vmem:[%s7 + $0x14] sm:$0xf]
    %v1587 = vld [vmem:[%s7 + $0x18] sm:$0xf]
    %v1588 = vld [vmem:[%s7 + $0x1c] sm:$0xf]
    %v1589 = vld [vmem:[%s7 + $0x20] sm:$0xf]
    %v1590 = vld [vmem:[%s7 + $0x24] sm:$0xf]
    %v1591 = vld [vmem:[%s7 + $0x28] sm:$0xf]
    %v1592 = vld [vmem:[%s7 + $0x2c] sm:$0xf]
    %v1593 = vld [vmem:[%s7 + $0x30] sm:$0xf]
    %v1594 = vld [vmem:[%s7 + $0x34] sm:$0xf]
    %v1595 = vld [vmem:[%s7 + $0x38] sm:$0xf]
    %v1596 = vld [vmem:[%s7 + $0x3c] sm:$0xf]
    %v1597 = vld [vmem:[#allocation11] sm:$0x1]
    %v1599 = vlaneseq
    %v1600 = vshrl.u32 %v1599, 7
    %v1601 = vsub.s32 0, %v1600
    %v1602 = vrot.slane %v1597, %v1601
    %v1620 = vunpack.c.l.b16 %v1581
    %v1621 = vunpack.c.l.b16 %v1582
    %v1622 = vunpack.c.l.b16 %v1583
    %v1623 = vunpack.c.l.b16 %v1584
    %v1624 = vunpack.c.l.b16 %v1585
    %v1625 = vunpack.c.l.b16 %v1586
    %v1626 = vunpack.c.l.b16 %v1587
    %v1627 = vunpack.c.l.b16 %v1588
    %v1628 = vunpack.c.l.b16 %v1589
    %v1629 = vunpack.c.l.b16 %v1590
    %v1630 = vunpack.c.l.b16 %v1591
    %v1631 = vunpack.c.l.b16 %v1592
    %v1632 = vunpack.c.l.b16 %v1593
    %v1633 = vunpack.c.l.b16 %v1594
    %v1634 = vunpack.c.l.b16 %v1595
    %v1635 = vunpack.c.l.b16 %v1596
    %v1636 = vpack.c.b16 %v1621, %v1620
    %v1637 = vpack.c.b16 %v1623, %v1622
    %v1638 = vpack.c.b16 %v1625, %v1624
    %v1639 = vpack.c.b16 %v1627, %v1626
    %v1640 = vpack.c.b16 %v1629, %v1628
    %v1641 = vpack.c.b16 %v1631, %v1630
    %v1642 = vpack.c.b16 %v1633, %v1632
    %v1643 = vpack.c.b16 %v1635, %v1634
    %1652 = vmatprep.subr.bf16.mxu0 0
    %1653 = vmatpush1.bf16.msra.mxu0 %v1636
    %1654 = vmatprep.subr.bf16.mxu0 0
    %1655 = vmatpush1.bf16.msra.mxu0 %v1637
    %1656 = vmatprep.subr.bf16.mxu0 0
    %1657 = vmatpush1.bf16.msra.mxu0 %v1638
    %1658 = vmatprep.subr.bf16.mxu0 0
    %1659 = vmatpush1.bf16.msra.mxu0 %v1639
    %1660 = vmatprep.subr.bf16.mxu0 0
    %1661 = vmatpush1.bf16.msra.mxu0 %v1640
    %1662 = vmatprep.subr.bf16.mxu0 0
    %1663 = vmatpush1.bf16.msra.mxu0 %v1641
    %1664 = vmatprep.subr.bf16.mxu0 0
    %1665 = vmatpush1.bf16.msra.mxu0 %v1642
    %1666 = vmatprep.subr.bf16.mxu0 0
    %1667 = vmatpush1.bf16.msra.mxu0 %v1643
    %1668 = vmatprep.subr.bf16.mxu0 0
    %1669 = vmatpush1.bf16.msra.mxu0 0
    %1670 = vmatprep.subr.bf16.mxu0 0
    %1671 = vmatpush1.bf16.msra.mxu0 0
    %1672 = vmatprep.subr.bf16.mxu0 0
    %1673 = vmatpush1.bf16.msra.mxu0 0
    %1674 = vmatprep.subr.bf16.mxu0 0
    %1675 = vmatpush1.bf16.msra.mxu0 0
    %1676 = vmatprep.subr.bf16.mxu0 0
    %1677 = vmatpush1.bf16.msra.mxu0 0
    %1678 = vmatprep.subr.bf16.mxu0 0
    %1679 = vmatpush1.bf16.msra.mxu0 0
    %1680 = vmatprep.subr.bf16.mxu0 0
    %1681 = vmatpush1.bf16.msra.mxu0 0
    %1682 = vmatprep.subr.bf16.mxu0 0
    %1683 = vmatpush1.bf16.msra.mxu0 0
    %1684 = vmatprep.mubr.bf16.mxu0 0
    %1685 = vmatmul.mubr.bf16.gmra.mrb[0].mxu0 %v1580
    %v1686 = vpop.f32.mrb[0].mxu0
    %v1687 = vadd.f32 %v1602, %v1686
    %v1688 = vpop.f32.mrb[0].mxu0
    %v1689 = vpop.f32.mrb[0].mxu0
    %v1690 = vpop.f32.mrb[0].mxu0
    %1691 = vdwg.mxu0
    %v1692 = vmax.f32 %v1687, 0.0
    %v1693 = vmin.f32 %v1692, 6.0
    %v1694 = vpack.c.bf16 %v1693, %v1693
    %v1695 = vld [vmem:[#allocation13] sm:$0xf]
    %v1696 = vld [vmem:[#allocation13 + $0x4] sm:$0xf]
    %v1697 = vld [vmem:[#allocation13 + $0x8] sm:$0xf]
    %v1698 = vld [vmem:[#allocation13 + $0xc] sm:$0xf]
    %v1699 = vld [vmem:[#allocation13 + $0x10] sm:$0xf]
    %v1700 = vld [vmem:[#allocation13 + $0x14] sm:$0xf]
    %v1701 = vld [vmem:[#allocation13 + $0x18] sm:$0xf]
    %v1702 = vld [vmem:[#allocation13 + $0x1c] sm:$0xf]
    %v1703 = vld [vmem:[#allocation13 + $0x20] sm:$0xf]
    %v1704 = vld [vmem:[#allocation13 + $0x24] sm:$0xf]
    %v1705 = vld [vmem:[#allocation13 + $0x28] sm:$0xf]
    %v1706 = vld [vmem:[#allocation13 + $0x2c] sm:$0xf]
    %v1707 = vld [vmem:[#allocation13 + $0x30] sm:$0xf]
    %v1708 = vld [vmem:[#allocation13 + $0x34] sm:$0xf]
    %v1709 = vld [vmem:[#allocation13 + $0x38] sm:$0xf]
    %v1710 = vld [vmem:[#allocation13 + $0x3c] sm:$0xf]
    %v1711 = vld [vmem:[#allocation14] sm:$0x1]
    %v1713 = vlaneseq
    %v1714 = vshrl.u32 %v1713, 7
    %v1715 = vsub.s32 0, %v1714
    %v1716 = vrot.slane %v1711, %v1715
    %v1734 = vunpack.c.l.b16 %v1695
    %v1735 = vunpack.c.l.b16 %v1696
    %v1736 = vunpack.c.l.b16 %v1697
    %v1737 = vunpack.c.l.b16 %v1698
    %v1738 = vunpack.c.l.b16 %v1699
    %v1739 = vunpack.c.l.b16 %v1700
    %v1740 = vunpack.c.l.b16 %v1701
    %v1741 = vunpack.c.l.b16 %v1702
    %v1742 = vunpack.c.l.b16 %v1703
    %v1743 = vunpack.c.l.b16 %v1704
    %v1744 = vunpack.c.l.b16 %v1705
    %v1745 = vunpack.c.l.b16 %v1706
    %v1746 = vunpack.c.l.b16 %v1707
    %v1747 = vunpack.c.l.b16 %v1708
    %v1748 = vunpack.c.l.b16 %v1709
    %v1749 = vunpack.c.l.b16 %v1710
    %v1750 = vpack.c.b16 %v1735, %v1734
    %v1751 = vpack.c.b16 %v1737, %v1736
    %v1752 = vpack.c.b16 %v1739, %v1738
    %v1753 = vpack.c.b16 %v1741, %v1740
    %v1754 = vpack.c.b16 %v1743, %v1742
    %v1755 = vpack.c.b16 %v1745, %v1744
    %v1756 = vpack.c.b16 %v1747, %v1746
    %v1757 = vpack.c.b16 %v1749, %v1748
    %1766 = vmatprep.subr.bf16.mxu0 0
    %1767 = vmatpush1.bf16.msra.mxu0 %v1750
    %1768 = vmatprep.subr.bf16.mxu0 0
    %1769 = vmatpush1.bf16.msra.mxu0 %v1751
    %1770 = vmatprep.subr.bf16.mxu0 0
    %1771 = vmatpush1.bf16.msra.mxu0 %v1752
    %1772 = vmatprep.subr.bf16.mxu0 0
    %1773 = vmatpush1.bf16.msra.mxu0 %v1753
    %1774 = vmatprep.subr.bf16.mxu0 0
    %1775 = vmatpush1.bf16.msra.mxu0 %v1754
    %1776 = vmatprep.subr.bf16.mxu0 0
    %1777 = vmatpush1.bf16.msra.mxu0 %v1755
    %1778 = vmatprep.subr.bf16.mxu0 0
    %1779 = vmatpush1.bf16.msra.mxu0 %v1756
    %1780 = vmatprep.subr.bf16.mxu0 0
    %1781 = vmatpush1.bf16.msra.mxu0 %v1757
    %1782 = vmatprep.subr.bf16.mxu0 0
    %1783 = vmatpush1.bf16.msra.mxu0 0
    %1784 = vmatprep.subr.bf16.mxu0 0
    %1785 = vmatpush1.bf16.msra.mxu0 0
    %1786 = vmatprep.subr.bf16.mxu0 0
    %1787 = vmatpush1.bf16.msra.mxu0 0
    %1788 = vmatprep.subr.bf16.mxu0 0
    %1789 = vmatpush1.bf16.msra.mxu0 0
    %1790 = vmatprep.subr.bf16.mxu0 0
    %1791 = vmatpush1.bf16.msra.mxu0 0
    %1792 = vmatprep.subr.bf16.mxu0 0
    %1793 = vmatpush1.bf16.msra.mxu0 0
    %1794 = vmatprep.subr.bf16.mxu0 0
    %1795 = vmatpush1.bf16.msra.mxu0 0
    %1796 = vmatprep.subr.bf16.mxu0 0
    %1797 = vmatpush1.bf16.msra.mxu0 0
    %1798 = vmatprep.mubr.bf16.mxu0 0
    %1799 = vmatmul.mubr.bf16.gmra.mrb[0].mxu0 %v1694
    %v1800 = vpop.f32.mrb[0].mxu0
    %v1801 = vadd.f32 %v1716, %v1800
    %v1802 = vpop.f32.mrb[0].mxu0
    %v1803 = vpop.f32.mrb[0].mxu0
    %v1804 = vpop.f32.mrb[0].mxu0
    %1805 = vdwg.mxu0
    %v1806 = vmax.f32 %v1801, 0.0
    %v1807 = vmin.f32 %v1806, 6.0
    %v1808 = vpack.c.bf16 %v1807, %v1807
    %v1809 = vld [vmem:[%s11] sm:$0xf]
    %v1810 = vld [vmem:[%s11 + $0x4] sm:$0xf]
    %v1811 = vld [vmem:[%s11 + $0x8] sm:$0xf]
    %v1812 = vld [vmem:[%s11 + $0xc] sm:$0xf]
    %v1813 = vld [vmem:[%s11 + $0x10] sm:$0xf]
    %v1814 = vld [vmem:[%s11 + $0x14] sm:$0xf]
    %v1815 = vld [vmem:[%s11 + $0x18] sm:$0xf]
    %v1816 = vld [vmem:[%s11 + $0x1c] sm:$0xf]
    %v1817 = vld [vmem:[%s11 + $0x20] sm:$0xf]
    %v1818 = vld [vmem:[%s11 + $0x24] sm:$0xf]
    %v1819 = vld [vmem:[%s11 + $0x28] sm:$0xf]
    %v1820 = vld [vmem:[%s11 + $0x2c] sm:$0xf]
    %v1821 = vld [vmem:[%s11 + $0x30] sm:$0xf]
    %v1822 = vld [vmem:[%s11 + $0x34] sm:$0xf]
    %v1823 = vld [vmem:[%s11 + $0x38] sm:$0xf]
    %v1824 = vld [vmem:[%s11 + $0x3c] sm:$0xf]
    %v1825 = vld [vmem:[#allocation16] sm:$0x1]
    %v1827 = vlaneseq
    %v1828 = vshrl.u32 %v1827, 7
    %v1829 = vsub.s32 0, %v1828
    %v1830 = vrot.slane %v1825, %v1829
    %v1848 = vunpack.c.l.b16 %v1809
    %v1849 = vunpack.c.l.b16 %v1810
    %v1850 = vunpack.c.l.b16 %v1811
    %v1851 = vunpack.c.l.b16 %v1812
    %v1852 = vunpack.c.l.b16 %v1813
    %v1853 = vunpack.c.l.b16 %v1814
    %v1854 = vunpack.c.l.b16 %v1815
    %v1855 = vunpack.c.l.b16 %v1816
    %v1856 = vunpack.c.l.b16 %v1817
    %v1857 = vunpack.c.l.b16 %v1818
    %v1858 = vunpack.c.l.b16 %v1819
    %v1859 = vunpack.c.l.b16 %v1820
    %v1860 = vunpack.c.l.b16 %v1821
    %v1861 = vunpack.c.l.b16 %v1822
    %v1862 = vunpack.c.l.b16 %v1823
    %v1863 = vunpack.c.l.b16 %v1824
    %v1864 = vpack.c.b16 %v1849, %v1848
    %v1865 = vpack.c.b16 %v1851, %v1850
    %v1866 = vpack.c.b16 %v1853, %v1852
    %v1867 = vpack.c.b16 %v1855, %v1854
    %v1868 = vpack.c.b16 %v1857, %v1856
    %v1869 = vpack.c.b16 %v1859, %v1858
    %v1870 = vpack.c.b16 %v1861, %v1860
    %v1871 = vpack.c.b16 %v1863, %v1862
    %1880 = vmatprep.subr.bf16.mxu0 0
    %1881 = vmatpush1.bf16.msra.mxu0 %v1864
    %1882 = vmatprep.subr.bf16.mxu0 0
    %1883 = vmatpush1.bf16.msra.mxu0 %v1865
    %1884 = vmatprep.subr.bf16.mxu0 0
    %1885 = vmatpush1.bf16.msra.mxu0 %v1866
    %1886 = vmatprep.subr.bf16.mxu0 0
    %1887 = vmatpush1.bf16.msra.mxu0 %v1867
    %1888 = vmatprep.subr.bf16.mxu0 0
    %1889 = vmatpush1.bf16.msra.mxu0 %v1868
    %1890 = vmatprep.subr.bf16.mxu0 0
    %1891 = vmatpush1.bf16.msra.mxu0 %v1869
    %1892 = vmatprep.subr.bf16.mxu0 0
    %1893 = vmatpush1.bf16.msra.mxu0 %v1870
    %1894 = vmatprep.subr.bf16.mxu0 0
    %1895 = vmatpush1.bf16.msra.mxu0 %v1871
    %1896 = vmatprep.subr.bf16.mxu0 0
    %1897 = vmatpush1.bf16.msra.mxu0 0
    %1898 = vmatprep.subr.bf16.mxu0 0
    %1899 = vmatpush1.bf16.msra.mxu0 0
    %1900 = vmatprep.subr.bf16.mxu0 0
    %1901 = vmatpush1.bf16.msra.mxu0 0
    %1902 = vmatprep.subr.bf16.mxu0 0
    %1903 = vmatpush1.bf16.msra.mxu0 0
    %1904 = vmatprep.subr.bf16.mxu0 0
    %1905 = vmatpush1.bf16.msra.mxu0 0
    %1906 = vmatprep.subr.bf16.mxu0 0
    %1907 = vmatpush1.bf16.msra.mxu0 0
    %1908 = vmatprep.subr.bf16.mxu0 0
    %1909 = vmatpush1.bf16.msra.mxu0 0
    %1910 = vmatprep.subr.bf16.mxu0 0
    %1911 = vmatpush1.bf16.msra.mxu0 0
    %1912 = vmatprep.mubr.bf16.mxu0 0
    %1913 = vmatmul.mubr.bf16.gmra.mrb[0].mxu0 %v1808
    %v1914 = vpop.f32.mrb[0].mxu0
    %v1915 = vadd.f32 %v1830, %v1914
    %v1916 = vpop.f32.mrb[0].mxu0
    %v1917 = vpop.f32.mrb[0].mxu0
    %v1918 = vpop.f32.mrb[0].mxu0
    %1919 = vdwg.mxu0
    %v1920 = vmax.f32 %v1915, 0.0
    %v1921 = vmin.f32 %v1920, 6.0
    %v1922 = vld [vmem:[#allocation17] sm:$0x1]
    %v1924 = vlaneseq
    %v1925 = vshrl.u32 %v1924, 7
    %v1926 = vsub.s32 0, %v1925
    %v1927 = vrot.slane %v1922, %v1926
    %v1929 = vmul.f32 %v1921, %v1927
    %1930 = vadd.xlane.f32.xlu0 %v1929
    %v1931 = vpop.xlane.xlu0 %1930
    %v1932 = vld [vmem:[#allocation2] sm:$0x1]
    %v1934 = vlaneseq
    %v1935 = vshrl.u32 %v1934, 7
    %v1936 = vsub.s32 0, %v1935
    %v1937 = vrot.slane %v1932, %v1936
    %v1939 = vadd.f32 %v1931, %v1937
    %v1940 = vxor.u32 %v1939, 2147483648
    %v1941 = vmul.f32 %v1940, 1.442695
    %v1942 = vpow.pop %v1941
    %v1943 = vadd.f32 %v1942, 1.0
    %v1944 = vrcp.pop %v1943
    %v1945 = vmul.f32 1.0, %v1944
    %vm1946 = vcmask 7168
    %1947 = vst.msk [vmem:[%s15] sm:$0xff] %vm1946, %v1945
    // Predicated region
    $region102: #{mci_forward.1} parent=1 // pred_check
      _
    $region103: #{mci_forward.1} parent=1 // pred_check_branch
      %1949 = sbr.rel (0) target = $region105
    $region104: #{mci_forward.1} parent=1 // pred_region
      _
    $region105: #{mci_forward.1} parent=1 // pred_fallthru
      _
    // Predicated region
    $region106: #{mci_forward.1} parent=1 // pred_check
      _
    $region107: #{mci_forward.1} parent=1 // pred_check_branch
      %1951 = sbr.rel (0) target = $region109
    $region108: #{mci_forward.1} parent=1 // pred_region
      _
    $region109: #{mci_forward.1} parent=1 // pred_fallthru
      _
    %1952 = vsyncpa [#allocation4], 1
    %1953 = vsyncpa [#allocation6], 1
    %1954 = vsyncpa [#allocation9], 1
    %1955 = vsyncpa [#allocation12], 1
    %1956 = vsyncpa [#allocation15], 1
    %1957 = vsyncpa [#allocation18], 1

</llo_original>
